<compile_context>
chip_gen: v7x
topology: tpu7x:2x2x1
jax: 0.10.0
libtpu: 0.0.40
codegen_flags: <defaults>
</compile_context>

<pallas_src>
import functools

import jax
import jax.numpy as jnp
from jax.experimental import pallas as pl
from jax.experimental.pallas import tpu as pltpu


def _round_up(x: int, m: int) -> int:
    return ((x + m - 1) // m) * m


# ----------------------------------------------------------------------------
# Fused (matmul + bias + optional sigmoid) Pallas kernel — the only compute
# kernel in the model; convs and the FC layer all go through it.
# ----------------------------------------------------------------------------
def _matmul_bias_act_kernel(a_ref, b_ref, bias_ref, o_ref, *, apply_sigmoid):
    # One (TM, Kp) x (Kp, Np) tile on the MXU, f32 accumulation.
    acc = jnp.dot(
        a_ref[...].astype(jnp.float32),
        b_ref[...].astype(jnp.float32),
        preferred_element_type=jnp.float32,
    )
    acc = acc + bias_ref[...].astype(jnp.float32)  # (1, Np) broadcast over rows
    if apply_sigmoid:
        # sigmoid(x) = 0.5 * (tanh(0.5 x) + 1): one EUP op + one VPU FMA.
        acc = 0.5 * (jnp.tanh(0.5 * acc) + 1.0)
    o_ref[...] = acc.astype(o_ref.dtype)


def fused_matmul_bias_act(a, b, bias, *, apply_sigmoid):
    """Computes act(a @ b + bias). a:(M,K), b:(K,N), bias:(N,)."""
    M, K = a.shape
    K2, N = b.shape
    assert K == K2 and bias.shape == (N,)

    TM = 256
    if M > TM:
        Mp = _round_up(M, TM)
        tile_m = TM
        grid_m = Mp // TM
    else:
        Mp = _round_up(M, 8)
        tile_m = Mp
        grid_m = 1
    Kp = _round_up(K, 128)
    Np = _round_up(N, 128)

    a_p = jnp.pad(a, ((0, Mp - M), (0, Kp - K)))
    b_p = jnp.pad(b, ((0, Kp - K), (0, Np - N)))
    bias_p = jnp.pad(bias, (0, Np - N)).reshape(1, Np)

    out_p = pl.pallas_call(
        functools.partial(_matmul_bias_act_kernel, apply_sigmoid=apply_sigmoid),
        out_shape=jax.ShapeDtypeStruct((Mp, Np), a.dtype),
        grid_spec=pltpu.PrefetchScalarGridSpec(
            num_scalar_prefetch=0,
            grid=(grid_m,),
            in_specs=[
                pl.BlockSpec((tile_m, Kp), lambda i: (i, 0)),
                pl.BlockSpec((Kp, Np), lambda i: (0, 0)),
                pl.BlockSpec((1, Np), lambda i: (0, 0)),
            ],
            out_specs=pl.BlockSpec((tile_m, Np), lambda i: (i, 0)),
        ),
        compiler_params=pltpu.CompilerParams(
            dimension_semantics=("parallel",),
        ),
    )(a_p, b_p, bias_p)
    return out_p[:M, :N]


# ----------------------------------------------------------------------------
# im2col (layout plumbing, pure jnp slicing in the wrapper).
# ----------------------------------------------------------------------------
def _im2col(x_nchw, *, ksize, stride, padding):
    B, C, H, W = x_nchw.shape
    x_pad = jnp.pad(x_nchw, ((0, 0), (0, 0), (padding, padding), (padding, padding)))
    Hp, Wp = H + 2 * padding, W + 2 * padding
    out_h = (Hp - ksize) // stride + 1
    out_w = (Wp - ksize) // stride + 1

    patches = []
    for dh in range(ksize):
        for dw in range(ksize):
            patches.append(
                x_pad[:, :, dh:dh + stride * out_h:stride, dw:dw + stride * out_w:stride]
            )  # (B, C, out_h, out_w)
    p = jnp.stack(patches, axis=0).reshape(ksize, ksize, B, C, out_h, out_w)
    p = p.transpose(2, 4, 5, 3, 0, 1)                # (B, oh, ow, C, kh, kw)
    cols = p.reshape(B * out_h * out_w, C * ksize * ksize)
    return cols, out_h, out_w


def _conv_sigmoid(x_nchw, w_oihw, bias, *, stride):
    """Conv2d(k=5, pad=2) + fused sigmoid, via im2col + Pallas MXU matmul."""
    B = x_nchw.shape[0]
    O = w_oihw.shape[0]
    cols, oh, ow = _im2col(x_nchw, ksize=5, stride=stride, padding=2)
    w_mat = w_oihw.reshape(O, -1).T                  # (C*25, O), matches col order
    y = fused_matmul_bias_act(cols, w_mat, bias, apply_sigmoid=True)
    return y.reshape(B, oh, ow, O).transpose(0, 3, 1, 2)  # back to NCHW


# ----------------------------------------------------------------------------
# Full LeNet_MNIST forward (Pallas compute) + pure-JAX reference.
# ----------------------------------------------------------------------------
def lenet_forward(params, x):
    h = _conv_sigmoid(x, params["w1"], params["b1"], stride=2)   # (B,12,14,14)
    h = _conv_sigmoid(h, params["w2"], params["b2"], stride=2)   # (B,12, 7, 7)
    h = _conv_sigmoid(h, params["w3"], params["b3"], stride=1)   # (B,12, 7, 7)
    B = x.shape[0]
    feature = h.reshape(B, 588)                                  # NCHW flatten order
    logits = fused_matmul_bias_act(
        feature, params["wf"].T, params["bf"], apply_sigmoid=False
    )
    return logits, feature, x


def lenet_reference(params, x):
    def conv(h, w, b, stride):
        y = jax.lax.conv_general_dilated(
            h, w, window_strides=(stride, stride), padding=((2, 2), (2, 2)),
            dimension_numbers=("NCHW", "OIHW", "NCHW"))
        return y + b.reshape(1, -1, 1, 1)

    h = jax.nn.sigmoid(conv(x, params["w1"], params["b1"], 2))
    h = jax.nn.sigmoid(conv(h, params["w2"], params["b2"], 2))
    h = jax.nn.sigmoid(conv(h, params["w3"], params["b3"], 1))
    feature = h.reshape(x.shape[0], 588)
    logits = feature @ params["wf"].T + params["bf"]
    return logits, feature, x


if __name__ == "__main__":
    key = jax.random.PRNGKey(0)
    k_x, k1, k2, k3, k4, k5, k6, k7, k8 = jax.random.split(key, 9)

    # MNIST-shaped input: (batch=2, channels=1, 28, 28) — required for the
    # 12*7*7 = 588 flattened feature of this LeNet variant.
    x = jax.random.normal(k_x, (2, 1, 28, 28), dtype=jnp.float32)

    def u(k, shape):  # matches weights_init: uniform(-0.5, 0.5)
        return jax.random.uniform(k, shape, jnp.float32, minval=-0.5, maxval=0.5)

    params = {
        "w1": u(k1, (12, 1, 5, 5)),  "b1": u(k2, (12,)),
        "w2": u(k3, (12, 12, 5, 5)), "b2": u(k4, (12,)),
        "w3": u(k5, (12, 12, 5, 5)), "b3": u(k6, (12,)),
        "wf": u(k7, (10, 588)),      "bf": u(k8, (10,)),
    }

    logits, feature, x_out = jax.jit(lenet_forward)(params, x)
    jax.block_until_ready((logits, feature, x_out))

    # Sanity check against the pure-JAX reference (tolerances account for
    # MXU bf16-pass matmul precision on both sides).
    logits_ref, feat_ref, _ = jax.jit(lenet_reference)(params, x)
    assert logits.shape == (2, 10)
    assert feature.shape == (2, 588)
    assert x_out.shape == x.shape
    assert bool(jnp.max(jnp.abs(feature - feat_ref)) < 2e-2)
    assert bool(jnp.max(jnp.abs(logits - logits_ref)) < 2e-1)

    print("KERNEL_OK")
</pallas_src>

<mosaic_0001>
module attributes {stable_mosaic.version = 11 : i64} {
  func.func @_matmul_bias_act_kernel(%arg0: i32, %arg1: memref<256x128xf32, #tpu.memory_space<vmem>>, %arg2: memref<128x128xf32, #tpu.memory_space<vmem>>, %arg3: memref<1x128xf32, #tpu.memory_space<vmem>>, %arg4: memref<256x128xf32, #tpu.memory_space<vmem>>) attributes {dimension_semantics = [#tpu.dimension_semantics<parallel>], iteration_bounds = array<i64: 2>, scalar_prefetch = 0 : i64, scratch_operands = 0 : i64, tpu.core_type = #tpu.core_type<tc>, window_params = [{transform_indices = @transform_0, window_bounds = array<i64: 256, 128>}, {pipeline_mode = #tpu.pipeline_mode<synchronous>, transform_indices = @transform_1, window_bounds = array<i64: 128, 128>}, {pipeline_mode = #tpu.pipeline_mode<synchronous>, transform_indices = @transform_2, window_bounds = array<i64: 1, 128>}, {transform_indices = @transform_3, window_bounds = array<i64: 256, 128>}]} {
    %c0 = arith.constant 0 : index
    %c0_0 = arith.constant 0 : index
    %0 = vector.load %arg1[%c0, %c0_0] : memref<256x128xf32, #tpu.memory_space<vmem>>, vector<256x128xf32>
    %c0_1 = arith.constant 0 : index
    %c0_2 = arith.constant 0 : index
    %1 = vector.load %arg2[%c0_1, %c0_2] : memref<128x128xf32, #tpu.memory_space<vmem>>, vector<128x128xf32>
    %cst = arith.constant dense<0.000000e+00> : vector<256x128xf32>
    %2 = tpu.matmul %0, %1, %cst {dimension_numbers = #tpu.dot_dimension_numbers<[1], [0], [0], [1], [0, 0, 1, 1], [], []>} : vector<256x128xf32>, vector<128x128xf32>, vector<256x128xf32> -> vector<256x128xf32>
    %c0_3 = arith.constant 0 : index
    %c0_4 = arith.constant 0 : index
    %3 = vector.load %arg3[%c0_3, %c0_4] : memref<1x128xf32, #tpu.memory_space<vmem>>, vector<1x128xf32>
    %4 = vector.broadcast %3 : vector<1x128xf32> to vector<256x128xf32>
    %5 = arith.addf %2, %4 : vector<256x128xf32>
    %cst_5 = arith.constant 5.000000e-01 : f32
    %6 = vector.broadcast %cst_5 : f32 to vector<256x128xf32>
    %7 = arith.mulf %6, %5 : vector<256x128xf32>
    %8 = math.tanh %7 : vector<256x128xf32>
    %cst_6 = arith.constant 1.000000e+00 : f32
    %9 = vector.broadcast %cst_6 : f32 to vector<256x128xf32>
    %10 = arith.addf %8, %9 : vector<256x128xf32>
    %cst_7 = arith.constant 5.000000e-01 : f32
    %11 = vector.broadcast %cst_7 : f32 to vector<256x128xf32>
    %12 = arith.mulf %11, %10 : vector<256x128xf32>
    %c0_8 = arith.constant 0 : index
    %c0_9 = arith.constant 0 : index
    %13 = vector.load %arg4[%c0_8, %c0_9] : memref<256x128xf32, #tpu.memory_space<vmem>>, vector<256x128xf32>
    tpu.vector_store %arg4[%c0_8, %c0_9], %12 {strides = array<i32>} : memref<256x128xf32, #tpu.memory_space<vmem>>, vector<256x128xf32>,
    return
  }
  func.func @transform_0(%arg0: i32) -> (i32, i32) {
    %c0_i32 = arith.constant 0 : i32
    %c0_i32_0 = arith.constant 0 : i32
    return %arg0, %c0_i32 : i32, i32
  }
  func.func @transform_1(%arg0: i32) -> (i32, i32) {
    %c0_i32 = arith.constant 0 : i32
    %c0_i32_0 = arith.constant 0 : i32
    %c0_i32_1 = arith.constant 0 : i32
    return %c0_i32, %c0_i32_0 : i32, i32
  }
  func.func @transform_2(%arg0: i32) -> (i32, i32) {
    %c0_i32 = arith.constant 0 : i32
    %c0_i32_0 = arith.constant 0 : i32
    %c0_i32_1 = arith.constant 0 : i32
    return %c0_i32, %c0_i32_0 : i32, i32
  }
  func.func @transform_3(%arg0: i32) -> (i32, i32) {
    %c0_i32 = arith.constant 0 : i32
    %c0_i32_0 = arith.constant 0 : i32
    return %arg0, %c0_i32 : i32, i32
  }
}

module attributes {stable_mosaic.version = 11 : i64} {
  func.func @_matmul_bias_act_kernel(%arg0: i32, %arg1: memref<104x384xf32, #tpu.memory_space<vmem>>, %arg2: memref<384x128xf32, #tpu.memory_space<vmem>>, %arg3: memref<1x128xf32, #tpu.memory_space<vmem>>, %arg4: memref<104x128xf32, #tpu.memory_space<vmem>>) attributes {dimension_semantics = [#tpu.dimension_semantics<parallel>], iteration_bounds = array<i64: 1>, scalar_prefetch = 0 : i64, scratch_operands = 0 : i64, tpu.core_type = #tpu.core_type<tc>, window_params = [{transform_indices = @transform_0, window_bounds = array<i64: 104, 384>}, {pipeline_mode = #tpu.pipeline_mode<synchronous>, transform_indices = @transform_1, window_bounds = array<i64: 384, 128>}, {pipeline_mode = #tpu.pipeline_mode<synchronous>, transform_indices = @transform_2, window_bounds = array<i64: 1, 128>}, {transform_indices = @transform_3, window_bounds = array<i64: 104, 128>}]} {
    %c0 = arith.constant 0 : index
    %c0_0 = arith.constant 0 : index
    %0 = vector.load %arg1[%c0, %c0_0] : memref<104x384xf32, #tpu.memory_space<vmem>>, vector<104x384xf32>
    %c0_1 = arith.constant 0 : index
    %c0_2 = arith.constant 0 : index
    %1 = vector.load %arg2[%c0_1, %c0_2] : memref<384x128xf32, #tpu.memory_space<vmem>>, vector<384x128xf32>
    %cst = arith.constant dense<0.000000e+00> : vector<104x128xf32>
    %2 = tpu.matmul %0, %1, %cst {dimension_numbers = #tpu.dot_dimension_numbers<[1], [0], [0], [1], [0, 0, 1, 1], [], []>} : vector<104x384xf32>, vector<384x128xf32>, vector<104x128xf32> -> vector<104x128xf32>
    %c0_3 = arith.constant 0 : index
    %c0_4 = arith.constant 0 : index
    %3 = vector.load %arg3[%c0_3, %c0_4] : memref<1x128xf32, #tpu.memory_space<vmem>>, vector<1x128xf32>
    %4 = vector.broadcast %3 : vector<1x128xf32> to vector<104x128xf32>
    %5 = arith.addf %2, %4 : vector<104x128xf32>
    %cst_5 = arith.constant 5.000000e-01 : f32
    %6 = vector.broadcast %cst_5 : f32 to vector<104x128xf32>
    %7 = arith.mulf %6, %5 : vector<104x128xf32>
    %8 = math.tanh %7 : vector<104x128xf32>
    %cst_6 = arith.constant 1.000000e+00 : f32
    %9 = vector.broadcast %cst_6 : f32 to vector<104x128xf32>
    %10 = arith.addf %8, %9 : vector<104x128xf32>
    %cst_7 = arith.constant 5.000000e-01 : f32
    %11 = vector.broadcast %cst_7 : f32 to vector<104x128xf32>
    %12 = arith.mulf %11, %10 : vector<104x128xf32>
    %c0_8 = arith.constant 0 : index
    %c0_9 = arith.constant 0 : index
    %13 = vector.load %arg4[%c0_8, %c0_9] : memref<104x128xf32, #tpu.memory_space<vmem>>, vector<104x128xf32>
    tpu.vector_store %arg4[%c0_8, %c0_9], %12 {strides = array<i32>} : memref<104x128xf32, #tpu.memory_space<vmem>>, vector<104x128xf32>,
    return
  }
  func.func @transform_0(%arg0: i32) -> (i32, i32) {
    %c0_i32 = arith.constant 0 : i32
    %c0_i32_0 = arith.constant 0 : i32
    return %arg0, %c0_i32 : i32, i32
  }
  func.func @transform_1(%arg0: i32) -> (i32, i32) {
    %c0_i32 = arith.constant 0 : i32
    %c0_i32_0 = arith.constant 0 : i32
    %c0_i32_1 = arith.constant 0 : i32
    return %c0_i32, %c0_i32_0 : i32, i32
  }
  func.func @transform_2(%arg0: i32) -> (i32, i32) {
    %c0_i32 = arith.constant 0 : i32
    %c0_i32_0 = arith.constant 0 : i32
    %c0_i32_1 = arith.constant 0 : i32
    return %c0_i32, %c0_i32_0 : i32, i32
  }
  func.func @transform_3(%arg0: i32) -> (i32, i32) {
    %c0_i32 = arith.constant 0 : i32
    %c0_i32_0 = arith.constant 0 : i32
    return %arg0, %c0_i32 : i32, i32
  }
}

module attributes {stable_mosaic.version = 11 : i64} {
  func.func @_matmul_bias_act_kernel(%arg0: i32, %arg1: memref<8x640xf32, #tpu.memory_space<vmem>>, %arg2: memref<640x128xf32, #tpu.memory_space<vmem>>, %arg3: memref<1x128xf32, #tpu.memory_space<vmem>>, %arg4: memref<8x128xf32, #tpu.memory_space<vmem>>) attributes {dimension_semantics = [#tpu.dimension_semantics<parallel>], iteration_bounds = array<i64: 1>, scalar_prefetch = 0 : i64, scratch_operands = 0 : i64, tpu.core_type = #tpu.core_type<tc>, window_params = [{transform_indices = @transform_0, window_bounds = array<i64: 8, 640>}, {pipeline_mode = #tpu.pipeline_mode<synchronous>, transform_indices = @transform_1, window_bounds = array<i64: 640, 128>}, {pipeline_mode = #tpu.pipeline_mode<synchronous>, transform_indices = @transform_2, window_bounds = array<i64: 1, 128>}, {transform_indices = @transform_3, window_bounds = array<i64: 8, 128>}]} {
    %c0 = arith.constant 0 : index
    %c0_0 = arith.constant 0 : index
    %0 = vector.load %arg1[%c0, %c0_0] : memref<8x640xf32, #tpu.memory_space<vmem>>, vector<8x640xf32>
    %c0_1 = arith.constant 0 : index
    %c0_2 = arith.constant 0 : index
    %1 = vector.load %arg2[%c0_1, %c0_2] : memref<640x128xf32, #tpu.memory_space<vmem>>, vector<640x128xf32>
    %cst = arith.constant dense<0.000000e+00> : vector<8x128xf32>
    %2 = tpu.matmul %0, %1, %cst {dimension_numbers = #tpu.dot_dimension_numbers<[1], [0], [0], [1], [0, 0, 1, 1], [], []>} : vector<8x640xf32>, vector<640x128xf32>, vector<8x128xf32> -> vector<8x128xf32>
    %c0_3 = arith.constant 0 : index
    %c0_4 = arith.constant 0 : index
    %3 = vector.load %arg3[%c0_3, %c0_4] : memref<1x128xf32, #tpu.memory_space<vmem>>, vector<1x128xf32>
    %4 = vector.broadcast %3 : vector<1x128xf32> to vector<8x128xf32>
    %5 = arith.addf %2, %4 : vector<8x128xf32>
    %c0_5 = arith.constant 0 : index
    %c0_6 = arith.constant 0 : index
    %6 = vector.load %arg4[%c0_5, %c0_6] : memref<8x128xf32, #tpu.memory_space<vmem>>, vector<8x128xf32>
    tpu.vector_store %arg4[%c0_5, %c0_6], %5 {strides = array<i32>} : memref<8x128xf32, #tpu.memory_space<vmem>>, vector<8x128xf32>,
    return
  }
  func.func @transform_0(%arg0: i32) -> (i32, i32) {
    %c0_i32 = arith.constant 0 : i32
    %c0_i32_0 = arith.constant 0 : i32
    return %arg0, %c0_i32 : i32, i32
  }
  func.func @transform_1(%arg0: i32) -> (i32, i32) {
    %c0_i32 = arith.constant 0 : i32
    %c0_i32_0 = arith.constant 0 : i32
    %c0_i32_1 = arith.constant 0 : i32
    return %c0_i32, %c0_i32_0 : i32, i32
  }
  func.func @transform_2(%arg0: i32) -> (i32, i32) {
    %c0_i32 = arith.constant 0 : i32
    %c0_i32_0 = arith.constant 0 : i32
    %c0_i32_1 = arith.constant 0 : i32
    return %c0_i32, %c0_i32_0 : i32, i32
  }
  func.func @transform_3(%arg0: i32) -> (i32, i32) {
    %c0_i32 = arith.constant 0 : i32
    %c0_i32_0 = arith.constant 0 : i32
    return %arg0, %c0_i32 : i32, i32
  }
}

</mosaic_0001>

<llo_original>
// kernel: lenet_forward.4
$region0: #{lenet_forward.4}
  #allocation0 [shape = 'u32[]', space=smem, size = 0x4, offset = 0x4, fixed_abs, tag = 'smem constant byte address 0x4 - core index']
  #allocation1 [shape = 'u32[144,128]{1,0:T(1,128)}', space=vmem, size = 0x12000, scoped, tag = 'internal scratch']
  %s0 = inlined_call_operand.vmem [shape: f32[512,128], index: 0, kind: input, shape index: {}]
  %s1 = inlined_call_operand.vmem [shape: f32[128,128], index: 1, kind: input, shape index: {}]
  %s2 = inlined_call_operand.vmem [shape: f32[1,128], index: 2, kind: input, shape index: {}]
  %s3 = inlined_call_operand.vmem [shape: f32[512,128], index: 3, kind: output, shape index: {}]
  %s4 = sld [smem:[#allocation0]]
  $region45: #{lenet_forward.4} parent=0
    _
  %s6 = ssub.s32 1, %s4
  %s7 = scalar_select 0, %s6, %s4
  loop: start=0, step=1, limit=4
  $region2: #{lenet_forward.4} parent=0 // loop_pre_header
    _
  $region3: #{lenet_forward.4} parent=0 // loop_header
    %s9 = sphi 0, %s13
    %p10 = scmp.ge.s32.totalorder %s9, 4
    %s19 = sphi 0, %s21
    %s22 = sphi 0, %s19
    %s23 = sphi 0, %s22
    %s39 = sphi 0, %s23
    %s43 = sphi 0, %s43
    %s45 = sphi 0, %s43
    %s46 = sphi 0, %s45
    %s60 = sphi 0, %s46
    %s64 = sphi 0, %s64
    %s66 = sphi 0, %s64
    %s67 = sphi 0, %s66
    %s81 = sphi 0, %s67
    %s87 = sphi 0, %s89
    %s90 = sphi 0, %s87
    %s91 = sphi 0, %s90
    %s107 = sphi 0, %s91
  $region4: #{lenet_forward.4} parent=0 // loop_header_branch
    %12 = sbr.rel (%p10) target = $region8
  $region5: #{lenet_forward.4} parent=0 // loop_body
    %s14 = ssub.s32 %s9, 1
    %s15 = ssub.s32 %s9, 2
    %s16 = sadd.s32 %s9, 1
    %s17 = ssub.s32 %s9, %s16
    %p18 = scmp.eq.s32.totalorder %s17, 0
    %s20 = sadd.s32 %s19, 1
    %s21 = scalar_select %p18, %s19, %s20
    %p24 = pneg %p18
    %p25 = scmp.eq.s32.totalorder %s9, 1
    %p26 = por %p24, %p25
    %p27 = scmp.ne.s32.totalorder %s19, %s22
    %p28 = scmp.eq.s32.totalorder %s9, 0
    %p29 = por %p27, %p28
    %p30 = scmp.ne.s32.totalorder %s19, %s22
    %p31 = scmp.eq.s32.totalorder %s14, 1
    %p32 = por %p30, %p31
    %p33 = scmp.ne.s32.totalorder %s22, %s23
    %p34 = scmp.eq.s32.totalorder %s14, 0
    %p35 = por %p33, %p34
    %p36 = scmp.ne.s32.totalorder %s22, %s23
    %p37 = scmp.eq.s32.totalorder %s15, 1
    %p38 = por %p36, %p37
    %p40 = scmp.ne.s32.totalorder %s23, %s39
    %p41 = scmp.eq.s32.totalorder %s15, 0
    %p42 = por %p40, %p41
    %s44 = sadd.s32 %s43, 1
    %p47 = scmp.eq.s32.totalorder %s9, 1
    %p48 = scmp.ne.s32.totalorder %s43, %s45
    %p49 = scmp.eq.s32.totalorder %s9, 0
    %p50 = por %p48, %p49
    %p51 = scmp.ne.s32.totalorder %s43, %s45
    %p52 = scmp.eq.s32.totalorder %s14, 1
    %p53 = por %p51, %p52
    %p54 = scmp.ne.s32.totalorder %s45, %s46
    %p55 = scmp.eq.s32.totalorder %s14, 0
    %p56 = por %p54, %p55
    %p57 = scmp.ne.s32.totalorder %s45, %s46
    %p58 = scmp.eq.s32.totalorder %s15, 1
    %p59 = por %p57, %p58
    %p61 = scmp.ne.s32.totalorder %s46, %s60
    %p62 = scmp.eq.s32.totalorder %s15, 0
    %p63 = por %p61, %p62
    %s65 = sadd.s32 %s64, 1
    %p68 = scmp.eq.s32.totalorder %s9, 1
    %p69 = scmp.ne.s32.totalorder %s64, %s66
    %p70 = scmp.eq.s32.totalorder %s9, 0
    %p71 = por %p69, %p70
    %p72 = scmp.ne.s32.totalorder %s64, %s66
    %p73 = scmp.eq.s32.totalorder %s14, 1
    %p74 = por %p72, %p73
    %p75 = scmp.ne.s32.totalorder %s66, %s67
    %p76 = scmp.eq.s32.totalorder %s14, 0
    %p77 = por %p75, %p76
    %p78 = scmp.ne.s32.totalorder %s66, %s67
    %p79 = scmp.eq.s32.totalorder %s15, 1
    %p80 = por %p78, %p79
    %p82 = scmp.ne.s32.totalorder %s67, %s81
    %p83 = scmp.eq.s32.totalorder %s15, 0
    %p84 = por %p82, %p83
    %s85 = ssub.s32 %s9, %s16
    %p86 = scmp.eq.s32.totalorder %s85, 0
    %s88 = sadd.s32 %s87, 1
    %s89 = scalar_select %p86, %s87, %s88
    %p92 = pneg %p86
    %p93 = scmp.eq.s32.totalorder %s9, 1
    %p94 = por %p92, %p93
    %p95 = scmp.ne.s32.totalorder %s87, %s90
    %p96 = scmp.eq.s32.totalorder %s9, 0
    %p97 = por %p95, %p96
    %p98 = scmp.ne.s32.totalorder %s87, %s90
    %p99 = scmp.eq.s32.totalorder %s14, 1
    %p100 = por %p98, %p99
    %p101 = scmp.ne.s32.totalorder %s90, %s91
    %p102 = scmp.eq.s32.totalorder %s14, 0
    %p103 = por %p101, %p102
    %p104 = scmp.ne.s32.totalorder %s90, %s91
    %p105 = scmp.eq.s32.totalorder %s15, 1
    %p106 = por %p104, %p105
    %p108 = scmp.ne.s32.totalorder %s91, %s107
    %p109 = scmp.eq.s32.totalorder %s15, 0
    %p110 = por %p108, %p109
    %p111 = scmp.le.s32.totalorder 1, %s9
    %p112 = scmp.lt.s32.totalorder %s9, 3
    %p113 = pnand %p111, %p112
    %p114 = pneg %p113
    // Predicated region
    $region9: #{lenet_forward.4} parent=5 // pred_check
      _
    $region10: #{lenet_forward.4} parent=5 // pred_check_branch
      %116 = sbr.rel (%p113) target = $region12
    $region11: #{lenet_forward.4} parent=5 // pred_region
      %s117 = ssub.s32 %s9, 1
      // Predicated region
      $region13: #{lenet_forward.4} parent=11 // pred_check
        %p118 = pneg %p56
      $region14: #{lenet_forward.4} parent=11 // pred_check_branch
        %120 = sbr.rel (%p118) target = $region16
      $region15: #{lenet_forward.4} parent=11 // pred_region
        _
      $region16: #{lenet_forward.4} parent=11 // pred_fallthru
        _
      // Predicated region
      $region17: #{lenet_forward.4} parent=11 // pred_check
        %p121 = pneg %p77
      $region18: #{lenet_forward.4} parent=11 // pred_check_branch
        %123 = sbr.rel (%p121) target = $region20
      $region19: #{lenet_forward.4} parent=11 // pred_region
        _
      $region20: #{lenet_forward.4} parent=11 // pred_fallthru
        _
    $region12: #{lenet_forward.4} parent=5 // pred_fallthru
      _
    %p124 = scmp.lt.s32.totalorder %s9, 2
    // Predicated region
    $region21: #{lenet_forward.4} parent=5 // pred_check
      %p125 = pneg %p124
    $region22: #{lenet_forward.4} parent=5 // pred_check_branch
      %127 = sbr.rel (%p125) target = $region24
    $region23: #{lenet_forward.4} parent=5 // pred_region
      // Predicated region
      $region25: #{lenet_forward.4} parent=23 // pred_check
        %p128 = pneg %p29
      $region26: #{lenet_forward.4} parent=23 // pred_check_branch
        %130 = sbr.rel (%p128) target = $region28
      $region27: #{lenet_forward.4} parent=23 // pred_region
        %s131 = smul.u32 32, %s9
        %p132 = scmp.lt.s32.totalorder %s131, 63
        %s133 = scalar_select %p132, %s131, 63
        %s134 = smul.addr %s133, 8
        %s135 = scalar_lea.vmem %s0, %s134
        %s136 = smul.u32 32, %s9
      $region28: #{lenet_forward.4} parent=23 // pred_fallthru
        _
    $region24: #{lenet_forward.4} parent=5 // pred_fallthru
      _
    %p137 = scmp.le.s32.totalorder 1, %s9
    %p138 = scmp.lt.s32.totalorder %s9, 3
    %p139 = pnand %p137, %p138
    %p140 = pneg %p139
    // Predicated region
    $region29: #{lenet_forward.4} parent=5 // pred_check
      _
    $region30: #{lenet_forward.4} parent=5 // pred_check_branch
      %142 = sbr.rel (%p139) target = $region32
    $region31: #{lenet_forward.4} parent=5 // pred_region
      %s143 = ssub.s32 %s9, 1
      %s144 = smul.u32 32, %s14
      %p145 = scmp.lt.s32.totalorder %s144, 63
      %s146 = scalar_select %p145, %s144, 63
      %s147 = smul.addr %s146, 8
      %s148 = scalar_lea.vmem %s0, %s147
      %p149 = pneg %p35
      %p150 = pneg %p32
      %p151 = pneg %p56
      %p152 = pneg %p53
      %p153 = pneg %p77
      %p154 = pneg %p74
      %p155 = pneg %p103
      %p156 = pneg %p100
      %s157 = smul.u32 32, %s14
      %p158 = scmp.lt.s32.totalorder %s157, 63
      %s159 = scalar_select %p158, %s157, 63
      %s160 = smul.addr %s159, 8
      %s161 = scalar_lea.vmem %s3, %s160
      %s162 = smul.u32 32, %s14
      %p163 = scmp.lt.s32.totalorder %s162, 63
      %s164 = scalar_select %p163, %s162, 63
      %s165 = smul.addr %s164, 8
      %s166 = scalar_lea.vmem %s0, %s165
      %s167 = smul.u32 32, %s14
      %s168 = smul.u32 32, %s14
      %p169 = scmp.lt.s32.totalorder %s168, 63
      %s170 = scalar_select %p169, %s168, 63
      %s171 = smul.addr %s170, 8
      %s172 = scalar_lea.vmem %s3, %s171
      %s173 = smul.u32 32, %s14
      %v174 = vld [vmem:[%s166] sm:$0xff]
      %v175 = vld [vmem:[%s166 + $0x8] sm:$0xff]
      %v176 = vld [vmem:[%s166 + $0x10] sm:$0xff]
      %v177 = vld [vmem:[%s166 + $0x18] sm:$0xff]
      %v178 = vld [vmem:[%s166 + $0x20] sm:$0xff]
      %v179 = vld [vmem:[%s166 + $0x28] sm:$0xff]
      %v180 = vld [vmem:[%s166 + $0x30] sm:$0xff]
      %v181 = vld [vmem:[%s166 + $0x38] sm:$0xff]
      %v182 = vld [vmem:[%s166 + $0x40] sm:$0xff]
      %v183 = vld [vmem:[%s166 + $0x48] sm:$0xff]
      %v184 = vld [vmem:[%s166 + $0x50] sm:$0xff]
      %v185 = vld [vmem:[%s166 + $0x58] sm:$0xff]
      %v186 = vld [vmem:[%s166 + $0x60] sm:$0xff]
      %v187 = vld [vmem:[%s166 + $0x68] sm:$0xff]
      %v188 = vld [vmem:[%s166 + $0x70] sm:$0xff]
      %v189 = vld [vmem:[%s166 + $0x78] sm:$0xff]
      %v190 = vld [vmem:[%s166 + $0x80] sm:$0xff]
      %v191 = vld [vmem:[%s166 + $0x88] sm:$0xff]
      %v192 = vld [vmem:[%s166 + $0x90] sm:$0xff]
      %v193 = vld [vmem:[%s166 + $0x98] sm:$0xff]
      %v194 = vld [vmem:[%s166 + $0xa0] sm:$0xff]
      %v195 = vld [vmem:[%s166 + $0xa8] sm:$0xff]
      %v196 = vld [vmem:[%s166 + $0xb0] sm:$0xff]
      %v197 = vld [vmem:[%s166 + $0xb8] sm:$0xff]
      %v198 = vld [vmem:[%s166 + $0xc0] sm:$0xff]
      %v199 = vld [vmem:[%s166 + $0xc8] sm:$0xff]
      %v200 = vld [vmem:[%s166 + $0xd0] sm:$0xff]
      %v201 = vld [vmem:[%s166 + $0xd8] sm:$0xff]
      %v202 = vld [vmem:[%s166 + $0xe0] sm:$0xff]
      %v203 = vld [vmem:[%s166 + $0xe8] sm:$0xff]
      %v204 = vld [vmem:[%s166 + $0xf0] sm:$0xff]
      %v205 = vld [vmem:[%s166 + $0xf8] sm:$0xff]
      %v206 = vld [vmem:[%s1] sm:$0xff]
      %v207 = vld [vmem:[%s1 + $0x8] sm:$0xff]
      %v208 = vld [vmem:[%s1 + $0x10] sm:$0xff]
      %v209 = vld [vmem:[%s1 + $0x18] sm:$0xff]
      %v210 = vld [vmem:[%s1 + $0x20] sm:$0xff]
      %v211 = vld [vmem:[%s1 + $0x28] sm:$0xff]
      %v212 = vld [vmem:[%s1 + $0x30] sm:$0xff]
      %v213 = vld [vmem:[%s1 + $0x38] sm:$0xff]
      %v214 = vld [vmem:[%s1 + $0x40] sm:$0xff]
      %v215 = vld [vmem:[%s1 + $0x48] sm:$0xff]
      %v216 = vld [vmem:[%s1 + $0x50] sm:$0xff]
      %v217 = vld [vmem:[%s1 + $0x58] sm:$0xff]
      %v218 = vld [vmem:[%s1 + $0x60] sm:$0xff]
      %v219 = vld [vmem:[%s1 + $0x68] sm:$0xff]
      %v220 = vld [vmem:[%s1 + $0x70] sm:$0xff]
      %v221 = vld [vmem:[%s1 + $0x78] sm:$0xff]
      %v222 = vld [vmem:[%s2] sm:$0x1]
      %v224 = vlaneseq
      %v225 = vshrl.u32 %v224, 7
      %v226 = vsub.s32 0, %v225
      %v227 = vrot.slane %v222, %v226
      %229 = vmatprep.subr.mxu0 0.0
      %230 = vmatpush1.msra.mxu0 %v206
      %231 = vmatprep.subr.mxu0 0.0
      %232 = vmatpush1.msra.mxu0 %v207
      %233 = vmatprep.subr.mxu0 0.0
      %234 = vmatpush1.msra.mxu0 %v208
      %235 = vmatprep.subr.mxu0 0.0
      %236 = vmatpush1.msra.mxu0 %v209
      %237 = vmatprep.subr.mxu0 0.0
      %238 = vmatpush1.msra.mxu0 %v210
      %239 = vmatprep.subr.mxu0 0.0
      %240 = vmatpush1.msra.mxu0 %v211
      %241 = vmatprep.subr.mxu0 0.0
      %242 = vmatpush1.msra.mxu0 %v212
      %243 = vmatprep.subr.mxu0 0.0
      %244 = vmatpush1.msra.mxu0 %v213
      %245 = vmatprep.subr.mxu0 0.0
      %246 = vmatpush1.msra.mxu0 %v214
      %247 = vmatprep.subr.mxu0 0.0
      %248 = vmatpush1.msra.mxu0 %v215
      %249 = vmatprep.subr.mxu0 0.0
      %250 = vmatpush1.msra.mxu0 %v216
      %251 = vmatprep.subr.mxu0 0.0
      %252 = vmatpush1.msra.mxu0 %v217
      %253 = vmatprep.subr.mxu0 0.0
      %254 = vmatpush1.msra.mxu0 %v218
      %255 = vmatprep.subr.mxu0 0.0
      %256 = vmatpush1.msra.mxu0 %v219
      %257 = vmatprep.subr.mxu0 0.0
      %258 = vmatpush1.msra.mxu0 %v220
      %259 = vmatprep.subr.mxu0 0.0
      %260 = vmatpush1.msra.mxu0 %v221
      %261 = vmatprep.subr.mxu0 0.0
      %262 = vmatpush1.msra.mxu0 0.0
      %263 = vmatprep.subr.mxu0 0.0
      %264 = vmatpush1.msra.mxu0 0.0
      %265 = vmatprep.subr.mxu0 0.0
      %266 = vmatpush1.msra.mxu0 0.0
      %267 = vmatprep.subr.mxu0 0.0
      %268 = vmatpush1.msra.mxu0 0.0
      %269 = vmatprep.subr.mxu0 0.0
      %270 = vmatpush1.msra.mxu0 0.0
      %271 = vmatprep.subr.mxu0 0.0
      %272 = vmatpush1.msra.mxu0 0.0
      %273 = vmatprep.subr.mxu0 0.0
      %274 = vmatpush1.msra.mxu0 0.0
      %275 = vmatprep.subr.mxu0 0.0
      %276 = vmatpush1.msra.mxu0 0.0
      %277 = vmatprep.subr.mxu0 0.0
      %278 = vmatpush1.msra.mxu0 0.0
      %279 = vmatprep.subr.mxu0 0.0
      %280 = vmatpush1.msra.mxu0 0.0
      %281 = vmatprep.subr.mxu0 0.0
      %282 = vmatpush1.msra.mxu0 0.0
      %283 = vmatprep.subr.mxu0 0.0
      %284 = vmatpush1.msra.mxu0 0.0
      %285 = vmatprep.subr.mxu0 0.0
      %286 = vmatpush1.msra.mxu0 0.0
      %287 = vmatprep.subr.mxu0 0.0
      %288 = vmatpush1.msra.mxu0 0.0
      %289 = vmatprep.subr.mxu0 0.0
      %290 = vmatpush1.msra.mxu0 0.0
      %291 = vmatprep.subr.mxu0 0.0
      %292 = vmatpush1.msra.mxu0 0.0
      %293 = vmatprep.mubr.f32.mxu0 0.0
      %294 = vmatmul.mubr.f32.gmra.mrb[0].mxu0 %v174
      %v295 = vpop.f32.mrb[0].mxu0
      %v296 = vadd.f32 %v227, %v295
      %v297 = vpop.f32.mrb[0].mxu0
      %298 = vmatprep.mubr.f32.mxu0 0.0
      %299 = vmatmul.mubr.f32.gmra.mrb[0].mxu0 %v175
      %v300 = vpop.f32.mrb[0].mxu0
      %v301 = vadd.f32 %v227, %v300
      %v302 = vpop.f32.mrb[0].mxu0
      %303 = vmatprep.mubr.f32.mxu0 0.0
      %304 = vmatmul.mubr.f32.gmra.mrb[0].mxu0 %v176
      %v305 = vpop.f32.mrb[0].mxu0
      %v306 = vadd.f32 %v227, %v305
      %v307 = vpop.f32.mrb[0].mxu0
      %308 = vmatprep.mubr.f32.mxu0 0.0
      %309 = vmatmul.mubr.f32.gmra.mrb[0].mxu0 %v177
      %v310 = vpop.f32.mrb[0].mxu0
      %v311 = vadd.f32 %v227, %v310
      %v312 = vpop.f32.mrb[0].mxu0
      %313 = vmatprep.mubr.f32.mxu0 0.0
      %314 = vmatmul.mubr.f32.gmra.mrb[0].mxu0 %v178
      %v315 = vpop.f32.mrb[0].mxu0
      %v316 = vadd.f32 %v227, %v315
      %v317 = vpop.f32.mrb[0].mxu0
      %318 = vmatprep.mubr.f32.mxu0 0.0
      %319 = vmatmul.mubr.f32.gmra.mrb[0].mxu0 %v179
      %v320 = vpop.f32.mrb[0].mxu0
      %v321 = vadd.f32 %v227, %v320
      %v322 = vpop.f32.mrb[0].mxu0
      %323 = vmatprep.mubr.f32.mxu0 0.0
      %324 = vmatmul.mubr.f32.gmra.mrb[0].mxu0 %v180
      %v325 = vpop.f32.mrb[0].mxu0
      %v326 = vadd.f32 %v227, %v325
      %v327 = vpop.f32.mrb[0].mxu0
      %328 = vmatprep.mubr.f32.mxu0 0.0
      %329 = vmatmul.mubr.f32.gmra.mrb[0].mxu0 %v181
      %v330 = vpop.f32.mrb[0].mxu0
      %v331 = vadd.f32 %v227, %v330
      %v332 = vpop.f32.mrb[0].mxu0
      %333 = vmatprep.mubr.f32.mxu0 0.0
      %334 = vmatmul.mubr.f32.gmra.mrb[0].mxu0 %v182
      %v335 = vpop.f32.mrb[0].mxu0
      %v336 = vadd.f32 %v227, %v335
      %v337 = vpop.f32.mrb[0].mxu0
      %338 = vmatprep.mubr.f32.mxu0 0.0
      %339 = vmatmul.mubr.f32.gmra.mrb[0].mxu0 %v183
      %v340 = vpop.f32.mrb[0].mxu0
      %v341 = vadd.f32 %v227, %v340
      %v342 = vpop.f32.mrb[0].mxu0
      %343 = vmatprep.mubr.f32.mxu0 0.0
      %344 = vmatmul.mubr.f32.gmra.mrb[0].mxu0 %v184
      %v345 = vpop.f32.mrb[0].mxu0
      %v346 = vadd.f32 %v227, %v345
      %v347 = vpop.f32.mrb[0].mxu0
      %348 = vmatprep.mubr.f32.mxu0 0.0
      %349 = vmatmul.mubr.f32.gmra.mrb[0].mxu0 %v185
      %v350 = vpop.f32.mrb[0].mxu0
      %v351 = vadd.f32 %v227, %v350
      %v352 = vpop.f32.mrb[0].mxu0
      %353 = vmatprep.mubr.f32.mxu0 0.0
      %354 = vmatmul.mubr.f32.gmra.mrb[0].mxu0 %v186
      %v355 = vpop.f32.mrb[0].mxu0
      %v356 = vadd.f32 %v227, %v355
      %v357 = vpop.f32.mrb[0].mxu0
      %358 = vmatprep.mubr.f32.mxu0 0.0
      %359 = vmatmul.mubr.f32.gmra.mrb[0].mxu0 %v187
      %v360 = vpop.f32.mrb[0].mxu0
      %v361 = vadd.f32 %v227, %v360
      %v362 = vpop.f32.mrb[0].mxu0
      %363 = vmatprep.mubr.f32.mxu0 0.0
      %364 = vmatmul.mubr.f32.gmra.mrb[0].mxu0 %v188
      %v365 = vpop.f32.mrb[0].mxu0
      %v366 = vadd.f32 %v227, %v365
      %v367 = vpop.f32.mrb[0].mxu0
      %368 = vmatprep.mubr.f32.mxu0 0.0
      %369 = vmatmul.mubr.f32.gmra.mrb[0].mxu0 %v189
      %v370 = vpop.f32.mrb[0].mxu0
      %v371 = vadd.f32 %v227, %v370
      %v372 = vpop.f32.mrb[0].mxu0
      %373 = vmatprep.mubr.f32.mxu0 0.0
      %374 = vmatmul.mubr.f32.gmra.mrb[0].mxu0 %v190
      %v375 = vpop.f32.mrb[0].mxu0
      %v376 = vadd.f32 %v227, %v375
      %v377 = vpop.f32.mrb[0].mxu0
      %378 = vmatprep.mubr.f32.mxu0 0.0
      %379 = vmatmul.mubr.f32.gmra.mrb[0].mxu0 %v191
      %v380 = vpop.f32.mrb[0].mxu0
      %v381 = vadd.f32 %v227, %v380
      %v382 = vpop.f32.mrb[0].mxu0
      %383 = vmatprep.mubr.f32.mxu0 0.0
      %384 = vmatmul.mubr.f32.gmra.mrb[0].mxu0 %v192
      %v385 = vpop.f32.mrb[0].mxu0
      %v386 = vadd.f32 %v227, %v385
      %v387 = vpop.f32.mrb[0].mxu0
      %388 = vmatprep.mubr.f32.mxu0 0.0
      %389 = vmatmul.mubr.f32.gmra.mrb[0].mxu0 %v193
      %v390 = vpop.f32.mrb[0].mxu0
      %v391 = vadd.f32 %v227, %v390
      %v392 = vpop.f32.mrb[0].mxu0
      %393 = vmatprep.mubr.f32.mxu0 0.0
      %394 = vmatmul.mubr.f32.gmra.mrb[0].mxu0 %v194
      %v395 = vpop.f32.mrb[0].mxu0
      %v396 = vadd.f32 %v227, %v395
      %v397 = vpop.f32.mrb[0].mxu0
      %398 = vmatprep.mubr.f32.mxu0 0.0
      %399 = vmatmul.mubr.f32.gmra.mrb[0].mxu0 %v195
      %v400 = vpop.f32.mrb[0].mxu0
      %v401 = vadd.f32 %v227, %v400
      %v402 = vpop.f32.mrb[0].mxu0
      %403 = vmatprep.mubr.f32.mxu0 0.0
      %404 = vmatmul.mubr.f32.gmra.mrb[0].mxu0 %v196
      %v405 = vpop.f32.mrb[0].mxu0
      %v406 = vadd.f32 %v227, %v405
      %v407 = vpop.f32.mrb[0].mxu0
      %408 = vmatprep.mubr.f32.mxu0 0.0
      %409 = vmatmul.mubr.f32.gmra.mrb[0].mxu0 %v197
      %v410 = vpop.f32.mrb[0].mxu0
      %v411 = vadd.f32 %v227, %v410
      %v412 = vpop.f32.mrb[0].mxu0
      %413 = vmatprep.mubr.f32.mxu0 0.0
      %414 = vmatmul.mubr.f32.gmra.mrb[0].mxu0 %v198
      %v415 = vpop.f32.mrb[0].mxu0
      %v416 = vadd.f32 %v227, %v415
      %v417 = vpop.f32.mrb[0].mxu0
      %418 = vmatprep.mubr.f32.mxu0 0.0
      %419 = vmatmul.mubr.f32.gmra.mrb[0].mxu0 %v199
      %v420 = vpop.f32.mrb[0].mxu0
      %v421 = vadd.f32 %v227, %v420
      %v422 = vpop.f32.mrb[0].mxu0
      %423 = vmatprep.mubr.f32.mxu0 0.0
      %424 = vmatmul.mubr.f32.gmra.mrb[0].mxu0 %v200
      %v425 = vpop.f32.mrb[0].mxu0
      %v426 = vadd.f32 %v227, %v425
      %v427 = vpop.f32.mrb[0].mxu0
      %428 = vmatprep.mubr.f32.mxu0 0.0
      %429 = vmatmul.mubr.f32.gmra.mrb[0].mxu0 %v201
      %v430 = vpop.f32.mrb[0].mxu0
      %v431 = vadd.f32 %v227, %v430
      %v432 = vpop.f32.mrb[0].mxu0
      %433 = vmatprep.mubr.f32.mxu0 0.0
      %434 = vmatmul.mubr.f32.gmra.mrb[0].mxu0 %v202
      %v435 = vpop.f32.mrb[0].mxu0
      %v436 = vadd.f32 %v227, %v435
      %v437 = vpop.f32.mrb[0].mxu0
      %438 = vmatprep.mubr.f32.mxu0 0.0
      %439 = vmatmul.mubr.f32.gmra.mrb[0].mxu0 %v203
      %v440 = vpop.f32.mrb[0].mxu0
      %v441 = vadd.f32 %v227, %v440
      %v442 = vpop.f32.mrb[0].mxu0
      %443 = vmatprep.mubr.f32.mxu0 0.0
      %444 = vmatmul.mubr.f32.gmra.mrb[0].mxu0 %v204
      %v445 = vpop.f32.mrb[0].mxu0
      %v446 = vadd.f32 %v227, %v445
      %v447 = vpop.f32.mrb[0].mxu0
      %448 = vmatprep.mubr.f32.mxu0 0.0
      %449 = vmatmul.mubr.f32.gmra.mrb[0].mxu0 %v205
      %v450 = vpop.f32.mrb[0].mxu0
      %v451 = vadd.f32 %v227, %v450
      %v452 = vpop.f32.mrb[0].mxu0
      %453 = vdwg.mxu0
      %v454 = vmul.f32 %v296, 0.5
      %v455 = vmul.f32 %v301, 0.5
      %v456 = vmul.f32 %v306, 0.5
      %v457 = vmul.f32 %v311, 0.5
      %v458 = vmul.f32 %v316, 0.5
      %v459 = vmul.f32 %v321, 0.5
      %v460 = vmul.f32 %v326, 0.5
      %v461 = vmul.f32 %v331, 0.5
      %v462 = vmul.f32 %v336, 0.5
      %v463 = vmul.f32 %v341, 0.5
      %v464 = vmul.f32 %v346, 0.5
      %v465 = vmul.f32 %v351, 0.5
      %v466 = vmul.f32 %v356, 0.5
      %v467 = vmul.f32 %v361, 0.5
      %v468 = vmul.f32 %v366, 0.5
      %v469 = vmul.f32 %v371, 0.5
      %v470 = vmul.f32 %v376, 0.5
      %v471 = vmul.f32 %v381, 0.5
      %v472 = vmul.f32 %v386, 0.5
      %v473 = vmul.f32 %v391, 0.5
      %v474 = vmul.f32 %v396, 0.5
      %v475 = vmul.f32 %v401, 0.5
      %v476 = vmul.f32 %v406, 0.5
      %v477 = vmul.f32 %v411, 0.5
      %v478 = vmul.f32 %v416, 0.5
      %v479 = vmul.f32 %v421, 0.5
      %v480 = vmul.f32 %v426, 0.5
      %v481 = vmul.f32 %v431, 0.5
      %v482 = vmul.f32 %v436, 0.5
      %v483 = vmul.f32 %v441, 0.5
      %v484 = vmul.f32 %v446, 0.5
      %v485 = vmul.f32 %v451, 0.5
      %v486 = vtanh.pop %v454
      %v487 = vtanh.pop %v455
      %v488 = vtanh.pop %v456
      %v489 = vtanh.pop %v457
      %v490 = vtanh.pop %v458
      %v491 = vtanh.pop %v459
      %v492 = vtanh.pop %v460
      %v493 = vtanh.pop %v461
      %v494 = vtanh.pop %v462
      %v495 = vtanh.pop %v463
      %v496 = vtanh.pop %v464
      %v497 = vtanh.pop %v465
      %v498 = vtanh.pop %v466
      %v499 = vtanh.pop %v467
      %v500 = vtanh.pop %v468
      %v501 = vtanh.pop %v469
      %v502 = vtanh.pop %v470
      %v503 = vtanh.pop %v471
      %v504 = vtanh.pop %v472
      %v505 = vtanh.pop %v473
      %v506 = vtanh.pop %v474
      %v507 = vtanh.pop %v475
      %v508 = vtanh.pop %v476
      %v509 = vtanh.pop %v477
      %v510 = vtanh.pop %v478
      %v511 = vtanh.pop %v479
      %v512 = vtanh.pop %v480
      %v513 = vtanh.pop %v481
      %v514 = vtanh.pop %v482
      %v515 = vtanh.pop %v483
      %v516 = vtanh.pop %v484
      %v517 = vtanh.pop %v485
      %v518 = vadd.f32 %v486, 1.0
      %v519 = vadd.f32 %v487, 1.0
      %v520 = vadd.f32 %v488, 1.0
      %v521 = vadd.f32 %v489, 1.0
      %v522 = vadd.f32 %v490, 1.0
      %v523 = vadd.f32 %v491, 1.0
      %v524 = vadd.f32 %v492, 1.0
      %v525 = vadd.f32 %v493, 1.0
      %v526 = vadd.f32 %v494, 1.0
      %v527 = vadd.f32 %v495, 1.0
      %v528 = vadd.f32 %v496, 1.0
      %v529 = vadd.f32 %v497, 1.0
      %v530 = vadd.f32 %v498, 1.0
      %v531 = vadd.f32 %v499, 1.0
      %v532 = vadd.f32 %v500, 1.0
      %v533 = vadd.f32 %v501, 1.0
      %v534 = vadd.f32 %v502, 1.0
      %v535 = vadd.f32 %v503, 1.0
      %v536 = vadd.f32 %v504, 1.0
      %v537 = vadd.f32 %v505, 1.0
      %v538 = vadd.f32 %v506, 1.0
      %v539 = vadd.f32 %v507, 1.0
      %v540 = vadd.f32 %v508, 1.0
      %v541 = vadd.f32 %v509, 1.0
      %v542 = vadd.f32 %v510, 1.0
      %v543 = vadd.f32 %v511, 1.0
      %v544 = vadd.f32 %v512, 1.0
      %v545 = vadd.f32 %v513, 1.0
      %v546 = vadd.f32 %v514, 1.0
      %v547 = vadd.f32 %v515, 1.0
      %v548 = vadd.f32 %v516, 1.0
      %v549 = vadd.f32 %v517, 1.0
      %v550 = vmul.f32 %v518, 0.5
      %v551 = vmul.f32 %v519, 0.5
      %v552 = vmul.f32 %v520, 0.5
      %v553 = vmul.f32 %v521, 0.5
      %v554 = vmul.f32 %v522, 0.5
      %v555 = vmul.f32 %v523, 0.5
      %v556 = vmul.f32 %v524, 0.5
      %v557 = vmul.f32 %v525, 0.5
      %v558 = vmul.f32 %v526, 0.5
      %v559 = vmul.f32 %v527, 0.5
      %v560 = vmul.f32 %v528, 0.5
      %v561 = vmul.f32 %v529, 0.5
      %v562 = vmul.f32 %v530, 0.5
      %v563 = vmul.f32 %v531, 0.5
      %v564 = vmul.f32 %v532, 0.5
      %v565 = vmul.f32 %v533, 0.5
      %v566 = vmul.f32 %v534, 0.5
      %v567 = vmul.f32 %v535, 0.5
      %v568 = vmul.f32 %v536, 0.5
      %v569 = vmul.f32 %v537, 0.5
      %v570 = vmul.f32 %v538, 0.5
      %v571 = vmul.f32 %v539, 0.5
      %v572 = vmul.f32 %v540, 0.5
      %v573 = vmul.f32 %v541, 0.5
      %v574 = vmul.f32 %v542, 0.5
      %v575 = vmul.f32 %v543, 0.5
      %v576 = vmul.f32 %v544, 0.5
      %v577 = vmul.f32 %v545, 0.5
      %v578 = vmul.f32 %v546, 0.5
      %v579 = vmul.f32 %v547, 0.5
      %v580 = vmul.f32 %v548, 0.5
      %v581 = vmul.f32 %v549, 0.5
      %582 = vst [vmem:[%s172] sm:$0xff] %v550
      %583 = vst [vmem:[%s172 + $0x8] sm:$0xff] %v551
      %584 = vst [vmem:[%s172 + $0x10] sm:$0xff] %v552
      %585 = vst [vmem:[%s172 + $0x18] sm:$0xff] %v553
      %586 = vst [vmem:[%s172 + $0x20] sm:$0xff] %v554
      %587 = vst [vmem:[%s172 + $0x28] sm:$0xff] %v555
      %588 = vst [vmem:[%s172 + $0x30] sm:$0xff] %v556
      %589 = vst [vmem:[%s172 + $0x38] sm:$0xff] %v557
      %590 = vst [vmem:[%s172 + $0x40] sm:$0xff] %v558
      %591 = vst [vmem:[%s172 + $0x48] sm:$0xff] %v559
      %592 = vst [vmem:[%s172 + $0x50] sm:$0xff] %v560
      %593 = vst [vmem:[%s172 + $0x58] sm:$0xff] %v561
      %594 = vst [vmem:[%s172 + $0x60] sm:$0xff] %v562
      %595 = vst [vmem:[%s172 + $0x68] sm:$0xff] %v563
      %596 = vst [vmem:[%s172 + $0x70] sm:$0xff] %v564
      %597 = vst [vmem:[%s172 + $0x78] sm:$0xff] %v565
      %598 = vst [vmem:[%s172 + $0x80] sm:$0xff] %v566
      %599 = vst [vmem:[%s172 + $0x88] sm:$0xff] %v567
      %600 = vst [vmem:[%s172 + $0x90] sm:$0xff] %v568
      %601 = vst [vmem:[%s172 + $0x98] sm:$0xff] %v569
      %602 = vst [vmem:[%s172 + $0xa0] sm:$0xff] %v570
      %603 = vst [vmem:[%s172 + $0xa8] sm:$0xff] %v571
      %604 = vst [vmem:[%s172 + $0xb0] sm:$0xff] %v572
      %605 = vst [vmem:[%s172 + $0xb8] sm:$0xff] %v573
      %606 = vst [vmem:[%s172 + $0xc0] sm:$0xff] %v574
      %607 = vst [vmem:[%s172 + $0xc8] sm:$0xff] %v575
      %608 = vst [vmem:[%s172 + $0xd0] sm:$0xff] %v576
      %609 = vst [vmem:[%s172 + $0xd8] sm:$0xff] %v577
      %610 = vst [vmem:[%s172 + $0xe0] sm:$0xff] %v578
      %611 = vst [vmem:[%s172 + $0xe8] sm:$0xff] %v579
      %612 = vst [vmem:[%s172 + $0xf0] sm:$0xff] %v580
      %613 = vst [vmem:[%s172 + $0xf8] sm:$0xff] %v581
      %s614 = smul.u32 32, %s14
      %p615 = scmp.lt.s32.totalorder %s614, 63
      %s616 = scalar_select %p615, %s614, 63
      %s617 = smul.addr %s616, 8
      %s618 = scalar_lea.vmem %s3, %s617
      // Predicated region
      $region33: #{lenet_forward.4} parent=31 // pred_check
        %p619 = pneg %p100
      $region34: #{lenet_forward.4} parent=31 // pred_check_branch
        %621 = sbr.rel (%p619) target = $region36
      $region35: #{lenet_forward.4} parent=31 // pred_region
        %s622 = smul.u32 32, %s14
      $region36: #{lenet_forward.4} parent=31 // pred_fallthru
        _
    $region32: #{lenet_forward.4} parent=5 // pred_fallthru
      _
    %p623 = scmp.le.s32.totalorder 2, %s9
    // Predicated region
    $region37: #{lenet_forward.4} parent=5 // pred_check
      %p624 = pneg %p623
    $region38: #{lenet_forward.4} parent=5 // pred_check_branch
      %626 = sbr.rel (%p624) target = $region40
    $region39: #{lenet_forward.4} parent=5 // pred_region
      %s627 = ssub.s32 %s9, 2
      // Predicated region
      $region41: #{lenet_forward.4} parent=39 // pred_check
        %p628 = pneg %p106
      $region42: #{lenet_forward.4} parent=39 // pred_check_branch
        %630 = sbr.rel (%p628) target = $region44
      $region43: #{lenet_forward.4} parent=39 // pred_region
        %s631 = smul.u32 32, %s15
        %p632 = scmp.lt.s32.totalorder %s631, 63
        %s633 = scalar_select %p632, %s631, 63
        %s634 = smul.addr %s633, 8
        %s635 = scalar_lea.vmem %s3, %s634
      $region44: #{lenet_forward.4} parent=39 // pred_fallthru
        _
    $region40: #{lenet_forward.4} parent=5 // pred_fallthru
      _
  $region6: #{lenet_forward.4} parent=0 // loop_footer
    %s13 = sadd.s32 1, %s9
  $region7: #{lenet_forward.4} parent=0 // loop_footer_branch
    %8 = sbr.rel target = $region3
  $region8: #{lenet_forward.4} parent=0 // loop_exit
    _

// kernel: lenet_forward.5
$region0: #{lenet_forward.5}
  #allocation0 [shape = 'u32[]', space=smem, size = 0x4, offset = 0x4, fixed_abs, tag = 'smem constant byte address 0x4 - core index']
  #allocation1 [shape = 'u32[144,128]{1,0:T(1,128)}', space=vmem, size = 0x12000, scoped, tag = 'internal scratch']
  %s0 = inlined_call_operand.vmem [shape: f32[104,384], index: 0, kind: input, shape index: {}]
  %s1 = inlined_call_operand.vmem [shape: f32[384,128], index: 1, kind: input, shape index: {}]
  %s2 = inlined_call_operand.vmem [shape: f32[1,128], index: 2, kind: input, shape index: {}]
  %s3 = inlined_call_operand.vmem [shape: f32[104,128], index: 3, kind: output, shape index: {}]
  %s4 = sld [smem:[#allocation0]]
  $region22: #{lenet_forward.5} parent=0
    _
  %s6 = ssub.s32 1, %s4
  %s7 = scalar_select 0, %s6, %s4
  // Predicated region
  $region2: #{lenet_forward.5} parent=0 // pred_check
    _
  $region3: #{lenet_forward.5} parent=0 // pred_check_branch
    %9 = sbr.rel (0) target = $region5
  $region4: #{lenet_forward.5} parent=0 // pred_region
    _
  $region5: #{lenet_forward.5} parent=0 // pred_fallthru
    _
  // Predicated region
  $region6: #{lenet_forward.5} parent=0 // pred_check
    _
  $region7: #{lenet_forward.5} parent=0 // pred_check_branch
    %11 = sbr.rel (0) target = $region9
  $region8: #{lenet_forward.5} parent=0 // pred_region
    _
  $region9: #{lenet_forward.5} parent=0 // pred_fallthru
    _
  // Predicated region
  $region10: #{lenet_forward.5} parent=0 // pred_check
    _
  $region11: #{lenet_forward.5} parent=0 // pred_check_branch
    %13 = sbr.rel (0) target = $region13
  $region12: #{lenet_forward.5} parent=0 // pred_region
    _
  $region13: #{lenet_forward.5} parent=0 // pred_fallthru
    _
  %v14 = vld [vmem:[%s0] sm:$0xff]
  %v15 = vld [vmem:[%s0 + $0x8] sm:$0xff]
  %v16 = vld [vmem:[%s0 + $0x10] sm:$0xff]
  %v17 = vld [vmem:[%s0 + $0x18] sm:$0xff]
  %v18 = vld [vmem:[%s0 + $0x20] sm:$0xff]
  %v19 = vld [vmem:[%s0 + $0x28] sm:$0xff]
  %v20 = vld [vmem:[%s0 + $0x30] sm:$0xff]
  %v21 = vld [vmem:[%s0 + $0x38] sm:$0xff]
  %v22 = vld [vmem:[%s0 + $0x40] sm:$0xff]
  %v23 = vld [vmem:[%s0 + $0x48] sm:$0xff]
  %v24 = vld [vmem:[%s0 + $0x50] sm:$0xff]
  %v25 = vld [vmem:[%s0 + $0x58] sm:$0xff]
  %v26 = vld [vmem:[%s0 + $0x60] sm:$0xff]
  %v27 = vld [vmem:[%s0 + $0x68] sm:$0xff]
  %v28 = vld [vmem:[%s0 + $0x70] sm:$0xff]
  %v29 = vld [vmem:[%s0 + $0x78] sm:$0xff]
  %v30 = vld [vmem:[%s0 + $0x80] sm:$0xff]
  %v31 = vld [vmem:[%s0 + $0x88] sm:$0xff]
  %v32 = vld [vmem:[%s0 + $0x90] sm:$0xff]
  %v33 = vld [vmem:[%s0 + $0x98] sm:$0xff]
  %v34 = vld [vmem:[%s0 + $0xa0] sm:$0xff]
  %v35 = vld [vmem:[%s0 + $0xa8] sm:$0xff]
  %v36 = vld [vmem:[%s0 + $0xb0] sm:$0xff]
  %v37 = vld [vmem:[%s0 + $0xb8] sm:$0xff]
  %v38 = vld [vmem:[%s0 + $0xc0] sm:$0xff]
  %v39 = vld [vmem:[%s0 + $0xc8] sm:$0xff]
  %v40 = vld [vmem:[%s0 + $0xd0] sm:$0xff]
  %v41 = vld [vmem:[%s0 + $0xd8] sm:$0xff]
  %v42 = vld [vmem:[%s0 + $0xe0] sm:$0xff]
  %v43 = vld [vmem:[%s0 + $0xe8] sm:$0xff]
  %v44 = vld [vmem:[%s0 + $0xf0] sm:$0xff]
  %v45 = vld [vmem:[%s0 + $0xf8] sm:$0xff]
  %v46 = vld [vmem:[%s0 + $0x100] sm:$0xff]
  %v47 = vld [vmem:[%s0 + $0x108] sm:$0xff]
  %v48 = vld [vmem:[%s0 + $0x110] sm:$0xff]
  %v49 = vld [vmem:[%s0 + $0x118] sm:$0xff]
  %v50 = vld [vmem:[%s0 + $0x120] sm:$0xff]
  %v51 = vld [vmem:[%s0 + $0x128] sm:$0xff]
  %v52 = vld [vmem:[%s0 + $0x130] sm:$0xff]
  %v53 = vld [vmem:[%s1] sm:$0xff]
  %v54 = vld [vmem:[%s1 + $0x8] sm:$0xff]
  %v55 = vld [vmem:[%s1 + $0x10] sm:$0xff]
  %v56 = vld [vmem:[%s1 + $0x18] sm:$0xff]
  %v57 = vld [vmem:[%s1 + $0x20] sm:$0xff]
  %v58 = vld [vmem:[%s1 + $0x28] sm:$0xff]
  %v59 = vld [vmem:[%s1 + $0x30] sm:$0xff]
  %v60 = vld [vmem:[%s1 + $0x38] sm:$0xff]
  %v61 = vld [vmem:[%s1 + $0x40] sm:$0xff]
  %v62 = vld [vmem:[%s1 + $0x48] sm:$0xff]
  %v63 = vld [vmem:[%s1 + $0x50] sm:$0xff]
  %v64 = vld [vmem:[%s1 + $0x58] sm:$0xff]
  %v65 = vld [vmem:[%s1 + $0x60] sm:$0xff]
  %v66 = vld [vmem:[%s1 + $0x68] sm:$0xff]
  %v67 = vld [vmem:[%s1 + $0x70] sm:$0xff]
  %v68 = vld [vmem:[%s1 + $0x78] sm:$0xff]
  %v69 = vld [vmem:[%s1 + $0x80] sm:$0xff]
  %v70 = vld [vmem:[%s1 + $0x88] sm:$0xff]
  %v71 = vld [vmem:[%s1 + $0x90] sm:$0xff]
  %v72 = vld [vmem:[%s1 + $0x98] sm:$0xff]
  %v73 = vld [vmem:[%s1 + $0xa0] sm:$0xff]
  %v74 = vld [vmem:[%s1 + $0xa8] sm:$0xff]
  %v75 = vld [vmem:[%s1 + $0xb0] sm:$0xff]
  %v76 = vld [vmem:[%s1 + $0xb8] sm:$0xff]
  %v77 = vld [vmem:[%s1 + $0xc0] sm:$0xff]
  %v78 = vld [vmem:[%s1 + $0xc8] sm:$0xff]
  %v79 = vld [vmem:[%s1 + $0xd0] sm:$0xff]
  %v80 = vld [vmem:[%s1 + $0xd8] sm:$0xff]
  %v81 = vld [vmem:[%s1 + $0xe0] sm:$0xff]
  %v82 = vld [vmem:[%s1 + $0xe8] sm:$0xff]
  %v83 = vld [vmem:[%s1 + $0xf0] sm:$0xff]
  %v84 = vld [vmem:[%s1 + $0xf8] sm:$0xff]
  %v85 = vld [vmem:[%s1 + $0x100] sm:$0xff]
  %v86 = vld [vmem:[%s1 + $0x108] sm:$0xff]
  %v87 = vld [vmem:[%s1 + $0x110] sm:$0xff]
  %v88 = vld [vmem:[%s1 + $0x118] sm:$0xff]
  %v89 = vld [vmem:[%s1 + $0x120] sm:$0xff]
  %v90 = vld [vmem:[%s1 + $0x128] sm:$0xff]
  %v91 = vld [vmem:[%s1 + $0x130] sm:$0xff]
  %v92 = vld [vmem:[%s1 + $0x138] sm:$0xff]
  %v93 = vld [vmem:[%s1 + $0x140] sm:$0xff]
  %v94 = vld [vmem:[%s1 + $0x148] sm:$0xff]
  %v95 = vld [vmem:[%s1 + $0x150] sm:$0xff]
  %v96 = vld [vmem:[%s1 + $0x158] sm:$0xff]
  %v97 = vld [vmem:[%s1 + $0x160] sm:$0xff]
  %v98 = vld [vmem:[%s1 + $0x168] sm:$0xff]
  %v99 = vld [vmem:[%s1 + $0x170] sm:$0xff]
  %v100 = vld [vmem:[%s1 + $0x178] sm:$0xff]
  %v101 = vld [vmem:[%s2] sm:$0x1]
  %v103 = vlaneseq
  %v104 = vshrl.u32 %v103, 7
  %v105 = vsub.s32 0, %v104
  %v106 = vrot.slane %v101, %v105
  %108 = vmatprep.subr.mxu0 0.0
  %109 = vmatpush1.msra.mxu0 %v53
  %110 = vmatprep.subr.mxu0 0.0
  %111 = vmatpush1.msra.mxu0 %v54
  %112 = vmatprep.subr.mxu0 0.0
  %113 = vmatpush1.msra.mxu0 %v55
  %114 = vmatprep.subr.mxu0 0.0
  %115 = vmatpush1.msra.mxu0 %v56
  %116 = vmatprep.subr.mxu0 0.0
  %117 = vmatpush1.msra.mxu0 %v57
  %118 = vmatprep.subr.mxu0 0.0
  %119 = vmatpush1.msra.mxu0 %v58
  %120 = vmatprep.subr.mxu0 0.0
  %121 = vmatpush1.msra.mxu0 %v59
  %122 = vmatprep.subr.mxu0 0.0
  %123 = vmatpush1.msra.mxu0 %v60
  %124 = vmatprep.subr.mxu0 0.0
  %125 = vmatpush1.msra.mxu0 %v61
  %126 = vmatprep.subr.mxu0 0.0
  %127 = vmatpush1.msra.mxu0 %v62
  %128 = vmatprep.subr.mxu0 0.0
  %129 = vmatpush1.msra.mxu0 %v63
  %130 = vmatprep.subr.mxu0 0.0
  %131 = vmatpush1.msra.mxu0 %v64
  %132 = vmatprep.subr.mxu0 0.0
  %133 = vmatpush1.msra.mxu0 %v65
  %134 = vmatprep.subr.mxu0 0.0
  %135 = vmatpush1.msra.mxu0 %v66
  %136 = vmatprep.subr.mxu0 0.0
  %137 = vmatpush1.msra.mxu0 %v67
  %138 = vmatprep.subr.mxu0 0.0
  %139 = vmatpush1.msra.mxu0 %v68
  %140 = vmatprep.subr.mxu0 0.0
  %141 = vmatpush1.msra.mxu0 %v69
  %142 = vmatprep.subr.mxu0 0.0
  %143 = vmatpush1.msra.mxu0 %v70
  %144 = vmatprep.subr.mxu0 0.0
  %145 = vmatpush1.msra.mxu0 %v71
  %146 = vmatprep.subr.mxu0 0.0
  %147 = vmatpush1.msra.mxu0 %v72
  %148 = vmatprep.subr.mxu0 0.0
  %149 = vmatpush1.msra.mxu0 %v73
  %150 = vmatprep.subr.mxu0 0.0
  %151 = vmatpush1.msra.mxu0 %v74
  %152 = vmatprep.subr.mxu0 0.0
  %153 = vmatpush1.msra.mxu0 %v75
  %154 = vmatprep.subr.mxu0 0.0
  %155 = vmatpush1.msra.mxu0 %v76
  %156 = vmatprep.subr.mxu0 0.0
  %157 = vmatpush1.msra.mxu0 %v77
  %158 = vmatprep.subr.mxu0 0.0
  %159 = vmatpush1.msra.mxu0 %v78
  %160 = vmatprep.subr.mxu0 0.0
  %161 = vmatpush1.msra.mxu0 %v79
  %162 = vmatprep.subr.mxu0 0.0
  %163 = vmatpush1.msra.mxu0 %v80
  %164 = vmatprep.subr.mxu0 0.0
  %165 = vmatpush1.msra.mxu0 %v81
  %166 = vmatprep.subr.mxu0 0.0
  %167 = vmatpush1.msra.mxu0 %v82
  %168 = vmatprep.subr.mxu0 0.0
  %169 = vmatpush1.msra.mxu0 %v83
  %170 = vmatprep.subr.mxu0 0.0
  %171 = vmatpush1.msra.mxu0 %v84
  %172 = vmatprep.mubr.f32.mxu0 %v15
  %173 = vmatmul.mubr.f32.gmra.mrb[0].mxu0 %v14
  %v174 = vpop.f32.mrb[0].mxu0
  %v175 = vadd.f32 %v106, %v174
  %v176 = vpop.f32.mrb[0].mxu0
  %177 = vmatprep.mubr.f32.mxu0 %v18
  %178 = vmatmul.mubr.f32.gmra.mrb[0].mxu0 %v17
  %v179 = vpop.f32.mrb[0].mxu0
  %v180 = vadd.f32 %v106, %v179
  %v181 = vpop.f32.mrb[0].mxu0
  %182 = vmatprep.mubr.f32.mxu0 %v21
  %183 = vmatmul.mubr.f32.gmra.mrb[0].mxu0 %v20
  %v184 = vpop.f32.mrb[0].mxu0
  %v185 = vadd.f32 %v106, %v184
  %v186 = vpop.f32.mrb[0].mxu0
  %187 = vmatprep.mubr.f32.mxu0 %v24
  %188 = vmatmul.mubr.f32.gmra.mrb[0].mxu0 %v23
  %v189 = vpop.f32.mrb[0].mxu0
  %v190 = vadd.f32 %v106, %v189
  %v191 = vpop.f32.mrb[0].mxu0
  %192 = vmatprep.mubr.f32.mxu0 %v27
  %193 = vmatmul.mubr.f32.gmra.mrb[0].mxu0 %v26
  %v194 = vpop.f32.mrb[0].mxu0
  %v195 = vadd.f32 %v106, %v194
  %v196 = vpop.f32.mrb[0].mxu0
  %197 = vmatprep.mubr.f32.mxu0 %v30
  %198 = vmatmul.mubr.f32.gmra.mrb[0].mxu0 %v29
  %v199 = vpop.f32.mrb[0].mxu0
  %v200 = vadd.f32 %v106, %v199
  %v201 = vpop.f32.mrb[0].mxu0
  %202 = vmatprep.mubr.f32.mxu0 %v33
  %203 = vmatmul.mubr.f32.gmra.mrb[0].mxu0 %v32
  %v204 = vpop.f32.mrb[0].mxu0
  %v205 = vadd.f32 %v106, %v204
  %v206 = vpop.f32.mrb[0].mxu0
  %207 = vmatprep.mubr.f32.mxu0 %v36
  %208 = vmatmul.mubr.f32.gmra.mrb[0].mxu0 %v35
  %v209 = vpop.f32.mrb[0].mxu0
  %v210 = vadd.f32 %v106, %v209
  %v211 = vpop.f32.mrb[0].mxu0
  %212 = vmatprep.mubr.f32.mxu0 %v39
  %213 = vmatmul.mubr.f32.gmra.mrb[0].mxu0 %v38
  %v214 = vpop.f32.mrb[0].mxu0
  %v215 = vadd.f32 %v106, %v214
  %v216 = vpop.f32.mrb[0].mxu0
  %217 = vmatprep.mubr.f32.mxu0 %v42
  %218 = vmatmul.mubr.f32.gmra.mrb[0].mxu0 %v41
  %v219 = vpop.f32.mrb[0].mxu0
  %v220 = vadd.f32 %v106, %v219
  %v221 = vpop.f32.mrb[0].mxu0
  %222 = vmatprep.mubr.f32.mxu0 %v45
  %223 = vmatmul.mubr.f32.gmra.mrb[0].mxu0 %v44
  %v224 = vpop.f32.mrb[0].mxu0
  %v225 = vadd.f32 %v106, %v224
  %v226 = vpop.f32.mrb[0].mxu0
  %227 = vmatprep.mubr.f32.mxu0 %v48
  %228 = vmatmul.mubr.f32.gmra.mrb[0].mxu0 %v47
  %v229 = vpop.f32.mrb[0].mxu0
  %v230 = vadd.f32 %v106, %v229
  %v231 = vpop.f32.mrb[0].mxu0
  %232 = vmatprep.mubr.f32.mxu0 %v51
  %233 = vmatmul.mubr.f32.gmra.mrb[0].mxu0 %v50
  %v234 = vpop.f32.mrb[0].mxu0
  %v235 = vadd.f32 %v106, %v234
  %v236 = vpop.f32.mrb[0].mxu0
  %237 = vdwg.mxu0
  %238 = vmatprep.subr.mxu0 0.0
  %239 = vmatpush1.msra.mxu0 %v85
  %240 = vmatprep.subr.mxu0 0.0
  %241 = vmatpush1.msra.mxu0 %v86
  %242 = vmatprep.subr.mxu0 0.0
  %243 = vmatpush1.msra.mxu0 %v87
  %244 = vmatprep.subr.mxu0 0.0
  %245 = vmatpush1.msra.mxu0 %v88
  %246 = vmatprep.subr.mxu0 0.0
  %247 = vmatpush1.msra.mxu0 %v89
  %248 = vmatprep.subr.mxu0 0.0
  %249 = vmatpush1.msra.mxu0 %v90
  %250 = vmatprep.subr.mxu0 0.0
  %251 = vmatpush1.msra.mxu0 %v91
  %252 = vmatprep.subr.mxu0 0.0
  %253 = vmatpush1.msra.mxu0 %v92
  %254 = vmatprep.subr.mxu0 0.0
  %255 = vmatpush1.msra.mxu0 %v93
  %256 = vmatprep.subr.mxu0 0.0
  %257 = vmatpush1.msra.mxu0 %v94
  %258 = vmatprep.subr.mxu0 0.0
  %259 = vmatpush1.msra.mxu0 %v95
  %260 = vmatprep.subr.mxu0 0.0
  %261 = vmatpush1.msra.mxu0 %v96
  %262 = vmatprep.subr.mxu0 0.0
  %263 = vmatpush1.msra.mxu0 %v97
  %264 = vmatprep.subr.mxu0 0.0
  %265 = vmatpush1.msra.mxu0 %v98
  %266 = vmatprep.subr.mxu0 0.0
  %267 = vmatpush1.msra.mxu0 %v99
  %268 = vmatprep.subr.mxu0 0.0
  %269 = vmatpush1.msra.mxu0 %v100
  %270 = vmatprep.subr.mxu0 0.0
  %271 = vmatpush1.msra.mxu0 0.0
  %272 = vmatprep.subr.mxu0 0.0
  %273 = vmatpush1.msra.mxu0 0.0
  %274 = vmatprep.subr.mxu0 0.0
  %275 = vmatpush1.msra.mxu0 0.0
  %276 = vmatprep.subr.mxu0 0.0
  %277 = vmatpush1.msra.mxu0 0.0
  %278 = vmatprep.subr.mxu0 0.0
  %279 = vmatpush1.msra.mxu0 0.0
  %280 = vmatprep.subr.mxu0 0.0
  %281 = vmatpush1.msra.mxu0 0.0
  %282 = vmatprep.subr.mxu0 0.0
  %283 = vmatpush1.msra.mxu0 0.0
  %284 = vmatprep.subr.mxu0 0.0
  %285 = vmatpush1.msra.mxu0 0.0
  %286 = vmatprep.subr.mxu0 0.0
  %287 = vmatpush1.msra.mxu0 0.0
  %288 = vmatprep.subr.mxu0 0.0
  %289 = vmatpush1.msra.mxu0 0.0
  %290 = vmatprep.subr.mxu0 0.0
  %291 = vmatpush1.msra.mxu0 0.0
  %292 = vmatprep.subr.mxu0 0.0
  %293 = vmatpush1.msra.mxu0 0.0
  %294 = vmatprep.subr.mxu0 0.0
  %295 = vmatpush1.msra.mxu0 0.0
  %296 = vmatprep.subr.mxu0 0.0
  %297 = vmatpush1.msra.mxu0 0.0
  %298 = vmatprep.subr.mxu0 0.0
  %299 = vmatpush1.msra.mxu0 0.0
  %300 = vmatprep.subr.mxu0 0.0
  %301 = vmatpush1.msra.mxu0 0.0
  %302 = vmatprep.mubr.f32.mxu0 0.0
  %303 = vmatmul.mubr.f32.gmra.mrb[0].mxu0 %v16
  %v304 = vpop.f32.mrb[0].mxu0
  %v305 = vadd.f32 %v175, %v304
  %v306 = vpop.f32.mrb[0].mxu0
  %307 = vmatprep.mubr.f32.mxu0 0.0
  %308 = vmatmul.mubr.f32.gmra.mrb[0].mxu0 %v19
  %v309 = vpop.f32.mrb[0].mxu0
  %v310 = vadd.f32 %v180, %v309
  %v311 = vpop.f32.mrb[0].mxu0
  %312 = vmatprep.mubr.f32.mxu0 0.0
  %313 = vmatmul.mubr.f32.gmra.mrb[0].mxu0 %v22
  %v314 = vpop.f32.mrb[0].mxu0
  %v315 = vadd.f32 %v185, %v314
  %v316 = vpop.f32.mrb[0].mxu0
  %317 = vmatprep.mubr.f32.mxu0 0.0
  %318 = vmatmul.mubr.f32.gmra.mrb[0].mxu0 %v25
  %v319 = vpop.f32.mrb[0].mxu0
  %v320 = vadd.f32 %v190, %v319
  %v321 = vpop.f32.mrb[0].mxu0
  %322 = vmatprep.mubr.f32.mxu0 0.0
  %323 = vmatmul.mubr.f32.gmra.mrb[0].mxu0 %v28
  %v324 = vpop.f32.mrb[0].mxu0
  %v325 = vadd.f32 %v195, %v324
  %v326 = vpop.f32.mrb[0].mxu0
  %327 = vmatprep.mubr.f32.mxu0 0.0
  %328 = vmatmul.mubr.f32.gmra.mrb[0].mxu0 %v31
  %v329 = vpop.f32.mrb[0].mxu0
  %v330 = vadd.f32 %v200, %v329
  %v331 = vpop.f32.mrb[0].mxu0
  %332 = vmatprep.mubr.f32.mxu0 0.0
  %333 = vmatmul.mubr.f32.gmra.mrb[0].mxu0 %v34
  %v334 = vpop.f32.mrb[0].mxu0
  %v335 = vadd.f32 %v205, %v334
  %v336 = vpop.f32.mrb[0].mxu0
  %337 = vmatprep.mubr.f32.mxu0 0.0
  %338 = vmatmul.mubr.f32.gmra.mrb[0].mxu0 %v37
  %v339 = vpop.f32.mrb[0].mxu0
  %v340 = vadd.f32 %v210, %v339
  %v341 = vpop.f32.mrb[0].mxu0
  %342 = vmatprep.mubr.f32.mxu0 0.0
  %343 = vmatmul.mubr.f32.gmra.mrb[0].mxu0 %v40
  %v344 = vpop.f32.mrb[0].mxu0
  %v345 = vadd.f32 %v215, %v344
  %v346 = vpop.f32.mrb[0].mxu0
  %347 = vmatprep.mubr.f32.mxu0 0.0
  %348 = vmatmul.mubr.f32.gmra.mrb[0].mxu0 %v43
  %v349 = vpop.f32.mrb[0].mxu0
  %v350 = vadd.f32 %v220, %v349
  %v351 = vpop.f32.mrb[0].mxu0
  %352 = vmatprep.mubr.f32.mxu0 0.0
  %353 = vmatmul.mubr.f32.gmra.mrb[0].mxu0 %v46
  %v354 = vpop.f32.mrb[0].mxu0
  %v355 = vadd.f32 %v225, %v354
  %v356 = vpop.f32.mrb[0].mxu0
  %357 = vmatprep.mubr.f32.mxu0 0.0
  %358 = vmatmul.mubr.f32.gmra.mrb[0].mxu0 %v49
  %v359 = vpop.f32.mrb[0].mxu0
  %v360 = vadd.f32 %v230, %v359
  %v361 = vpop.f32.mrb[0].mxu0
  %362 = vmatprep.mubr.f32.mxu0 0.0
  %363 = vmatmul.mubr.f32.gmra.mrb[0].mxu0 %v52
  %v364 = vpop.f32.mrb[0].mxu0
  %v365 = vadd.f32 %v235, %v364
  %v366 = vpop.f32.mrb[0].mxu0
  %367 = vdwg.mxu0
  %v368 = vmul.f32 %v305, 0.5
  %v369 = vmul.f32 %v310, 0.5
  %v370 = vmul.f32 %v315, 0.5
  %v371 = vmul.f32 %v320, 0.5
  %v372 = vmul.f32 %v325, 0.5
  %v373 = vmul.f32 %v330, 0.5
  %v374 = vmul.f32 %v335, 0.5
  %v375 = vmul.f32 %v340, 0.5
  %v376 = vmul.f32 %v345, 0.5
  %v377 = vmul.f32 %v350, 0.5
  %v378 = vmul.f32 %v355, 0.5
  %v379 = vmul.f32 %v360, 0.5
  %v380 = vmul.f32 %v365, 0.5
  %v381 = vtanh.pop %v368
  %v382 = vtanh.pop %v369
  %v383 = vtanh.pop %v370
  %v384 = vtanh.pop %v371
  %v385 = vtanh.pop %v372
  %v386 = vtanh.pop %v373
  %v387 = vtanh.pop %v374
  %v388 = vtanh.pop %v375
  %v389 = vtanh.pop %v376
  %v390 = vtanh.pop %v377
  %v391 = vtanh.pop %v378
  %v392 = vtanh.pop %v379
  %v393 = vtanh.pop %v380
  %v394 = vadd.f32 %v381, 1.0
  %v395 = vadd.f32 %v382, 1.0
  %v396 = vadd.f32 %v383, 1.0
  %v397 = vadd.f32 %v384, 1.0
  %v398 = vadd.f32 %v385, 1.0
  %v399 = vadd.f32 %v386, 1.0
  %v400 = vadd.f32 %v387, 1.0
  %v401 = vadd.f32 %v388, 1.0
  %v402 = vadd.f32 %v389, 1.0
  %v403 = vadd.f32 %v390, 1.0
  %v404 = vadd.f32 %v391, 1.0
  %v405 = vadd.f32 %v392, 1.0
  %v406 = vadd.f32 %v393, 1.0
  %v407 = vmul.f32 %v394, 0.5
  %v408 = vmul.f32 %v395, 0.5
  %v409 = vmul.f32 %v396, 0.5
  %v410 = vmul.f32 %v397, 0.5
  %v411 = vmul.f32 %v398, 0.5
  %v412 = vmul.f32 %v399, 0.5
  %v413 = vmul.f32 %v400, 0.5
  %v414 = vmul.f32 %v401, 0.5
  %v415 = vmul.f32 %v402, 0.5
  %v416 = vmul.f32 %v403, 0.5
  %v417 = vmul.f32 %v404, 0.5
  %v418 = vmul.f32 %v405, 0.5
  %v419 = vmul.f32 %v406, 0.5
  %420 = vst [vmem:[%s3] sm:$0xff] %v407
  %421 = vst [vmem:[%s3 + $0x8] sm:$0xff] %v408
  %422 = vst [vmem:[%s3 + $0x10] sm:$0xff] %v409
  %423 = vst [vmem:[%s3 + $0x18] sm:$0xff] %v410
  %424 = vst [vmem:[%s3 + $0x20] sm:$0xff] %v411
  %425 = vst [vmem:[%s3 + $0x28] sm:$0xff] %v412
  %426 = vst [vmem:[%s3 + $0x30] sm:$0xff] %v413
  %427 = vst [vmem:[%s3 + $0x38] sm:$0xff] %v414
  %428 = vst [vmem:[%s3 + $0x40] sm:$0xff] %v415
  %429 = vst [vmem:[%s3 + $0x48] sm:$0xff] %v416
  %430 = vst [vmem:[%s3 + $0x50] sm:$0xff] %v417
  %431 = vst [vmem:[%s3 + $0x58] sm:$0xff] %v418
  %432 = vst [vmem:[%s3 + $0x60] sm:$0xff] %v419
  // Predicated region
  $region14: #{lenet_forward.5} parent=0 // pred_check
    _
  $region15: #{lenet_forward.5} parent=0 // pred_check_branch
    %434 = sbr.rel (0) target = $region17
  $region16: #{lenet_forward.5} parent=0 // pred_region
    _
  $region17: #{lenet_forward.5} parent=0 // pred_fallthru
    _
  // Predicated region
  $region18: #{lenet_forward.5} parent=0 // pred_check
    _
  $region19: #{lenet_forward.5} parent=0 // pred_check_branch
    %436 = sbr.rel (0) target = $region21
  $region20: #{lenet_forward.5} parent=0 // pred_region
    _
  $region21: #{lenet_forward.5} parent=0 // pred_fallthru
    _

// kernel: lenet_forward.7
$region0: #{lenet_forward.7}
  #allocation0 [shape = 'u32[]', space=smem, size = 0x4, offset = 0x4, fixed_abs, tag = 'smem constant byte address 0x4 - core index']
  #allocation1 [shape = 'u32[144,128]{1,0:T(1,128)}', space=vmem, size = 0x12000, scoped, tag = 'internal scratch']
  %s0 = inlined_call_operand.vmem [shape: f32[8,640], index: 0, kind: input, shape index: {}]
  %s1 = inlined_call_operand.vmem [shape: f32[640,128], index: 1, kind: input, shape index: {}]
  %s2 = inlined_call_operand.vmem [shape: f32[1,128], index: 2, kind: input, shape index: {}]
  %s3 = inlined_call_operand.vmem [shape: f32[8,128], index: 3, kind: output, shape index: {}]
  %s4 = sld [smem:[#allocation0]]
  $region22: #{lenet_forward.7} parent=0
    _
  %s6 = ssub.s32 1, %s4
  %s7 = scalar_select 0, %s6, %s4
  // Predicated region
  $region2: #{lenet_forward.7} parent=0 // pred_check
    _
  $region3: #{lenet_forward.7} parent=0 // pred_check_branch
    %9 = sbr.rel (0) target = $region5
  $region4: #{lenet_forward.7} parent=0 // pred_region
    _
  $region5: #{lenet_forward.7} parent=0 // pred_fallthru
    _
  // Predicated region
  $region6: #{lenet_forward.7} parent=0 // pred_check
    _
  $region7: #{lenet_forward.7} parent=0 // pred_check_branch
    %11 = sbr.rel (0) target = $region9
  $region8: #{lenet_forward.7} parent=0 // pred_region
    _
  $region9: #{lenet_forward.7} parent=0 // pred_fallthru
    _
  // Predicated region
  $region10: #{lenet_forward.7} parent=0 // pred_check
    _
  $region11: #{lenet_forward.7} parent=0 // pred_check_branch
    %13 = sbr.rel (0) target = $region13
  $region12: #{lenet_forward.7} parent=0 // pred_region
    _
  $region13: #{lenet_forward.7} parent=0 // pred_fallthru
    _
  %v14 = vld [vmem:[%s0] sm:$0xff]
  %v15 = vld [vmem:[%s0 + $0x8] sm:$0xff]
  %v16 = vld [vmem:[%s0 + $0x10] sm:$0xff]
  %v17 = vld [vmem:[%s0 + $0x18] sm:$0xff]
  %v18 = vld [vmem:[%s0 + $0x20] sm:$0xff]
  %v19 = vld [vmem:[%s1] sm:$0xff]
  %v20 = vld [vmem:[%s1 + $0x8] sm:$0xff]
  %v21 = vld [vmem:[%s1 + $0x10] sm:$0xff]
  %v22 = vld [vmem:[%s1 + $0x18] sm:$0xff]
  %v23 = vld [vmem:[%s1 + $0x20] sm:$0xff]
  %v24 = vld [vmem:[%s1 + $0x28] sm:$0xff]
  %v25 = vld [vmem:[%s1 + $0x30] sm:$0xff]
  %v26 = vld [vmem:[%s1 + $0x38] sm:$0xff]
  %v27 = vld [vmem:[%s1 + $0x40] sm:$0xff]
  %v28 = vld [vmem:[%s1 + $0x48] sm:$0xff]
  %v29 = vld [vmem:[%s1 + $0x50] sm:$0xff]
  %v30 = vld [vmem:[%s1 + $0x58] sm:$0xff]
  %v31 = vld [vmem:[%s1 + $0x60] sm:$0xff]
  %v32 = vld [vmem:[%s1 + $0x68] sm:$0xff]
  %v33 = vld [vmem:[%s1 + $0x70] sm:$0xff]
  %v34 = vld [vmem:[%s1 + $0x78] sm:$0xff]
  %v35 = vld [vmem:[%s1 + $0x80] sm:$0xff]
  %v36 = vld [vmem:[%s1 + $0x88] sm:$0xff]
  %v37 = vld [vmem:[%s1 + $0x90] sm:$0xff]
  %v38 = vld [vmem:[%s1 + $0x98] sm:$0xff]
  %v39 = vld [vmem:[%s1 + $0xa0] sm:$0xff]
  %v40 = vld [vmem:[%s1 + $0xa8] sm:$0xff]
  %v41 = vld [vmem:[%s1 + $0xb0] sm:$0xff]
  %v42 = vld [vmem:[%s1 + $0xb8] sm:$0xff]
  %v43 = vld [vmem:[%s1 + $0xc0] sm:$0xff]
  %v44 = vld [vmem:[%s1 + $0xc8] sm:$0xff]
  %v45 = vld [vmem:[%s1 + $0xd0] sm:$0xff]
  %v46 = vld [vmem:[%s1 + $0xd8] sm:$0xff]
  %v47 = vld [vmem:[%s1 + $0xe0] sm:$0xff]
  %v48 = vld [vmem:[%s1 + $0xe8] sm:$0xff]
  %v49 = vld [vmem:[%s1 + $0xf0] sm:$0xff]
  %v50 = vld [vmem:[%s1 + $0xf8] sm:$0xff]
  %v51 = vld [vmem:[%s1 + $0x100] sm:$0xff]
  %v52 = vld [vmem:[%s1 + $0x108] sm:$0xff]
  %v53 = vld [vmem:[%s1 + $0x110] sm:$0xff]
  %v54 = vld [vmem:[%s1 + $0x118] sm:$0xff]
  %v55 = vld [vmem:[%s1 + $0x120] sm:$0xff]
  %v56 = vld [vmem:[%s1 + $0x128] sm:$0xff]
  %v57 = vld [vmem:[%s1 + $0x130] sm:$0xff]
  %v58 = vld [vmem:[%s1 + $0x138] sm:$0xff]
  %v59 = vld [vmem:[%s1 + $0x140] sm:$0xff]
  %v60 = vld [vmem:[%s1 + $0x148] sm:$0xff]
  %v61 = vld [vmem:[%s1 + $0x150] sm:$0xff]
  %v62 = vld [vmem:[%s1 + $0x158] sm:$0xff]
  %v63 = vld [vmem:[%s1 + $0x160] sm:$0xff]
  %v64 = vld [vmem:[%s1 + $0x168] sm:$0xff]
  %v65 = vld [vmem:[%s1 + $0x170] sm:$0xff]
  %v66 = vld [vmem:[%s1 + $0x178] sm:$0xff]
  %v67 = vld [vmem:[%s1 + $0x180] sm:$0xff]
  %v68 = vld [vmem:[%s1 + $0x188] sm:$0xff]
  %v69 = vld [vmem:[%s1 + $0x190] sm:$0xff]
  %v70 = vld [vmem:[%s1 + $0x198] sm:$0xff]
  %v71 = vld [vmem:[%s1 + $0x1a0] sm:$0xff]
  %v72 = vld [vmem:[%s1 + $0x1a8] sm:$0xff]
  %v73 = vld [vmem:[%s1 + $0x1b0] sm:$0xff]
  %v74 = vld [vmem:[%s1 + $0x1b8] sm:$0xff]
  %v75 = vld [vmem:[%s1 + $0x1c0] sm:$0xff]
  %v76 = vld [vmem:[%s1 + $0x1c8] sm:$0xff]
  %v77 = vld [vmem:[%s1 + $0x1d0] sm:$0xff]
  %v78 = vld [vmem:[%s1 + $0x1d8] sm:$0xff]
  %v79 = vld [vmem:[%s1 + $0x1e0] sm:$0xff]
  %v80 = vld [vmem:[%s1 + $0x1e8] sm:$0xff]
  %v81 = vld [vmem:[%s1 + $0x1f0] sm:$0xff]
  %v82 = vld [vmem:[%s1 + $0x1f8] sm:$0xff]
  %v83 = vld [vmem:[%s1 + $0x200] sm:$0xff]
  %v84 = vld [vmem:[%s1 + $0x208] sm:$0xff]
  %v85 = vld [vmem:[%s1 + $0x210] sm:$0xff]
  %v86 = vld [vmem:[%s1 + $0x218] sm:$0xff]
  %v87 = vld [vmem:[%s1 + $0x220] sm:$0xff]
  %v88 = vld [vmem:[%s1 + $0x228] sm:$0xff]
  %v89 = vld [vmem:[%s1 + $0x230] sm:$0xff]
  %v90 = vld [vmem:[%s1 + $0x238] sm:$0xff]
  %v91 = vld [vmem:[%s1 + $0x240] sm:$0xff]
  %v92 = vld [vmem:[%s1 + $0x248] sm:$0xff]
  %v93 = vld [vmem:[%s1 + $0x250] sm:$0xff]
  %v94 = vld [vmem:[%s1 + $0x258] sm:$0xff]
  %v95 = vld [vmem:[%s1 + $0x260] sm:$0xff]
  %v96 = vld [vmem:[%s1 + $0x268] sm:$0xff]
  %v97 = vld [vmem:[%s1 + $0x270] sm:$0xff]
  %v98 = vld [vmem:[%s1 + $0x278] sm:$0xff]
  %v99 = vld [vmem:[%s2] sm:$0x1]
  %v101 = vlaneseq
  %v102 = vshrl.u32 %v101, 7
  %v103 = vsub.s32 0, %v102
  %v104 = vrot.slane %v99, %v103
  %106 = vmatprep.subr.mxu0 0.0
  %107 = vmatpush1.msra.mxu0 %v19
  %108 = vmatprep.subr.mxu0 0.0
  %109 = vmatpush1.msra.mxu0 %v20
  %110 = vmatprep.subr.mxu0 0.0
  %111 = vmatpush1.msra.mxu0 %v21
  %112 = vmatprep.subr.mxu0 0.0
  %113 = vmatpush1.msra.mxu0 %v22
  %114 = vmatprep.subr.mxu0 0.0
  %115 = vmatpush1.msra.mxu0 %v23
  %116 = vmatprep.subr.mxu0 0.0
  %117 = vmatpush1.msra.mxu0 %v24
  %118 = vmatprep.subr.mxu0 0.0
  %119 = vmatpush1.msra.mxu0 %v25
  %120 = vmatprep.subr.mxu0 0.0
  %121 = vmatpush1.msra.mxu0 %v26
  %122 = vmatprep.subr.mxu0 0.0
  %123 = vmatpush1.msra.mxu0 %v27
  %124 = vmatprep.subr.mxu0 0.0
  %125 = vmatpush1.msra.mxu0 %v28
  %126 = vmatprep.subr.mxu0 0.0
  %127 = vmatpush1.msra.mxu0 %v29
  %128 = vmatprep.subr.mxu0 0.0
  %129 = vmatpush1.msra.mxu0 %v30
  %130 = vmatprep.subr.mxu0 0.0
  %131 = vmatpush1.msra.mxu0 %v31
  %132 = vmatprep.subr.mxu0 0.0
  %133 = vmatpush1.msra.mxu0 %v32
  %134 = vmatprep.subr.mxu0 0.0
  %135 = vmatpush1.msra.mxu0 %v33
  %136 = vmatprep.subr.mxu0 0.0
  %137 = vmatpush1.msra.mxu0 %v34
  %138 = vmatprep.subr.mxu0 0.0
  %139 = vmatpush1.msra.mxu0 %v35
  %140 = vmatprep.subr.mxu0 0.0
  %141 = vmatpush1.msra.mxu0 %v36
  %142 = vmatprep.subr.mxu0 0.0
  %143 = vmatpush1.msra.mxu0 %v37
  %144 = vmatprep.subr.mxu0 0.0
  %145 = vmatpush1.msra.mxu0 %v38
  %146 = vmatprep.subr.mxu0 0.0
  %147 = vmatpush1.msra.mxu0 %v39
  %148 = vmatprep.subr.mxu0 0.0
  %149 = vmatpush1.msra.mxu0 %v40
  %150 = vmatprep.subr.mxu0 0.0
  %151 = vmatpush1.msra.mxu0 %v41
  %152 = vmatprep.subr.mxu0 0.0
  %153 = vmatpush1.msra.mxu0 %v42
  %154 = vmatprep.subr.mxu0 0.0
  %155 = vmatpush1.msra.mxu0 %v43
  %156 = vmatprep.subr.mxu0 0.0
  %157 = vmatpush1.msra.mxu0 %v44
  %158 = vmatprep.subr.mxu0 0.0
  %159 = vmatpush1.msra.mxu0 %v45
  %160 = vmatprep.subr.mxu0 0.0
  %161 = vmatpush1.msra.mxu0 %v46
  %162 = vmatprep.subr.mxu0 0.0
  %163 = vmatpush1.msra.mxu0 %v47
  %164 = vmatprep.subr.mxu0 0.0
  %165 = vmatpush1.msra.mxu0 %v48
  %166 = vmatprep.subr.mxu0 0.0
  %167 = vmatpush1.msra.mxu0 %v49
  %168 = vmatprep.subr.mxu0 0.0
  %169 = vmatpush1.msra.mxu0 %v50
  %170 = vmatprep.mubr.f32.mxu0 %v15
  %171 = vmatmul.mubr.f32.gmra.mrb[0].mxu0 %v14
  %v172 = vpop.f32.mrb[0].mxu0
  %v173 = vadd.f32 %v104, %v172
  %v174 = vpop.f32.mrb[0].mxu0
  %175 = vdwg.mxu0
  %176 = vmatprep.subr.mxu0 0.0
  %177 = vmatpush1.msra.mxu0 %v51
  %178 = vmatprep.subr.mxu0 0.0
  %179 = vmatpush1.msra.mxu0 %v52
  %180 = vmatprep.subr.mxu0 0.0
  %181 = vmatpush1.msra.mxu0 %v53
  %182 = vmatprep.subr.mxu0 0.0
  %183 = vmatpush1.msra.mxu0 %v54
  %184 = vmatprep.subr.mxu0 0.0
  %185 = vmatpush1.msra.mxu0 %v55
  %186 = vmatprep.subr.mxu0 0.0
  %187 = vmatpush1.msra.mxu0 %v56
  %188 = vmatprep.subr.mxu0 0.0
  %189 = vmatpush1.msra.mxu0 %v57
  %190 = vmatprep.subr.mxu0 0.0
  %191 = vmatpush1.msra.mxu0 %v58
  %192 = vmatprep.subr.mxu0 0.0
  %193 = vmatpush1.msra.mxu0 %v59
  %194 = vmatprep.subr.mxu0 0.0
  %195 = vmatpush1.msra.mxu0 %v60
  %196 = vmatprep.subr.mxu0 0.0
  %197 = vmatpush1.msra.mxu0 %v61
  %198 = vmatprep.subr.mxu0 0.0
  %199 = vmatpush1.msra.mxu0 %v62
  %200 = vmatprep.subr.mxu0 0.0
  %201 = vmatpush1.msra.mxu0 %v63
  %202 = vmatprep.subr.mxu0 0.0
  %203 = vmatpush1.msra.mxu0 %v64
  %204 = vmatprep.subr.mxu0 0.0
  %205 = vmatpush1.msra.mxu0 %v65
  %206 = vmatprep.subr.mxu0 0.0
  %207 = vmatpush1.msra.mxu0 %v66
  %208 = vmatprep.subr.mxu0 0.0
  %209 = vmatpush1.msra.mxu0 %v67
  %210 = vmatprep.subr.mxu0 0.0
  %211 = vmatpush1.msra.mxu0 %v68
  %212 = vmatprep.subr.mxu0 0.0
  %213 = vmatpush1.msra.mxu0 %v69
  %214 = vmatprep.subr.mxu0 0.0
  %215 = vmatpush1.msra.mxu0 %v70
  %216 = vmatprep.subr.mxu0 0.0
  %217 = vmatpush1.msra.mxu0 %v71
  %218 = vmatprep.subr.mxu0 0.0
  %219 = vmatpush1.msra.mxu0 %v72
  %220 = vmatprep.subr.mxu0 0.0
  %221 = vmatpush1.msra.mxu0 %v73
  %222 = vmatprep.subr.mxu0 0.0
  %223 = vmatpush1.msra.mxu0 %v74
  %224 = vmatprep.subr.mxu0 0.0
  %225 = vmatpush1.msra.mxu0 %v75
  %226 = vmatprep.subr.mxu0 0.0
  %227 = vmatpush1.msra.mxu0 %v76
  %228 = vmatprep.subr.mxu0 0.0
  %229 = vmatpush1.msra.mxu0 %v77
  %230 = vmatprep.subr.mxu0 0.0
  %231 = vmatpush1.msra.mxu0 %v78
  %232 = vmatprep.subr.mxu0 0.0
  %233 = vmatpush1.msra.mxu0 %v79
  %234 = vmatprep.subr.mxu0 0.0
  %235 = vmatpush1.msra.mxu0 %v80
  %236 = vmatprep.subr.mxu0 0.0
  %237 = vmatpush1.msra.mxu0 %v81
  %238 = vmatprep.subr.mxu0 0.0
  %239 = vmatpush1.msra.mxu0 %v82
  %240 = vmatprep.mubr.f32.mxu0 %v17
  %241 = vmatmul.mubr.f32.gmra.mrb[0].mxu0 %v16
  %v242 = vpop.f32.mrb[0].mxu0
  %v243 = vadd.f32 %v173, %v242
  %v244 = vpop.f32.mrb[0].mxu0
  %245 = vdwg.mxu0
  %246 = vmatprep.subr.mxu0 0.0
  %247 = vmatpush1.msra.mxu0 %v83
  %248 = vmatprep.subr.mxu0 0.0
  %249 = vmatpush1.msra.mxu0 %v84
  %250 = vmatprep.subr.mxu0 0.0
  %251 = vmatpush1.msra.mxu0 %v85
  %252 = vmatprep.subr.mxu0 0.0
  %253 = vmatpush1.msra.mxu0 %v86
  %254 = vmatprep.subr.mxu0 0.0
  %255 = vmatpush1.msra.mxu0 %v87
  %256 = vmatprep.subr.mxu0 0.0
  %257 = vmatpush1.msra.mxu0 %v88
  %258 = vmatprep.subr.mxu0 0.0
  %259 = vmatpush1.msra.mxu0 %v89
  %260 = vmatprep.subr.mxu0 0.0
  %261 = vmatpush1.msra.mxu0 %v90
  %262 = vmatprep.subr.mxu0 0.0
  %263 = vmatpush1.msra.mxu0 %v91
  %264 = vmatprep.subr.mxu0 0.0
  %265 = vmatpush1.msra.mxu0 %v92
  %266 = vmatprep.subr.mxu0 0.0
  %267 = vmatpush1.msra.mxu0 %v93
  %268 = vmatprep.subr.mxu0 0.0
  %269 = vmatpush1.msra.mxu0 %v94
  %270 = vmatprep.subr.mxu0 0.0
  %271 = vmatpush1.msra.mxu0 %v95
  %272 = vmatprep.subr.mxu0 0.0
  %273 = vmatpush1.msra.mxu0 %v96
  %274 = vmatprep.subr.mxu0 0.0
  %275 = vmatpush1.msra.mxu0 %v97
  %276 = vmatprep.subr.mxu0 0.0
  %277 = vmatpush1.msra.mxu0 %v98
  %278 = vmatprep.subr.mxu0 0.0
  %279 = vmatpush1.msra.mxu0 0.0
  %280 = vmatprep.subr.mxu0 0.0
  %281 = vmatpush1.msra.mxu0 0.0
  %282 = vmatprep.subr.mxu0 0.0
  %283 = vmatpush1.msra.mxu0 0.0
  %284 = vmatprep.subr.mxu0 0.0
  %285 = vmatpush1.msra.mxu0 0.0
  %286 = vmatprep.subr.mxu0 0.0
  %287 = vmatpush1.msra.mxu0 0.0
  %288 = vmatprep.subr.mxu0 0.0
  %289 = vmatpush1.msra.mxu0 0.0
  %290 = vmatprep.subr.mxu0 0.0
  %291 = vmatpush1.msra.mxu0 0.0
  %292 = vmatprep.subr.mxu0 0.0
  %293 = vmatpush1.msra.mxu0 0.0
  %294 = vmatprep.subr.mxu0 0.0
  %295 = vmatpush1.msra.mxu0 0.0
  %296 = vmatprep.subr.mxu0 0.0
  %297 = vmatpush1.msra.mxu0 0.0
  %298 = vmatprep.subr.mxu0 0.0
  %299 = vmatpush1.msra.mxu0 0.0
  %300 = vmatprep.subr.mxu0 0.0
  %301 = vmatpush1.msra.mxu0 0.0
  %302 = vmatprep.subr.mxu0 0.0
  %303 = vmatpush1.msra.mxu0 0.0
  %304 = vmatprep.subr.mxu0 0.0
  %305 = vmatpush1.msra.mxu0 0.0
  %306 = vmatprep.subr.mxu0 0.0
  %307 = vmatpush1.msra.mxu0 0.0
  %308 = vmatprep.subr.mxu0 0.0
  %309 = vmatpush1.msra.mxu0 0.0
  %310 = vmatprep.mubr.f32.mxu0 0.0
  %311 = vmatmul.mubr.f32.gmra.mrb[0].mxu0 %v18
  %v312 = vpop.f32.mrb[0].mxu0
  %v313 = vadd.f32 %v243, %v312
  %v314 = vpop.f32.mrb[0].mxu0
  %315 = vdwg.mxu0
  %316 = vst [vmem:[%s3] sm:$0xff] %v313
  // Predicated region
  $region14: #{lenet_forward.7} parent=0 // pred_check
    _
  $region15: #{lenet_forward.7} parent=0 // pred_check_branch
    %318 = sbr.rel (0) target = $region17
  $region16: #{lenet_forward.7} parent=0 // pred_region
    _
  $region17: #{lenet_forward.7} parent=0 // pred_fallthru
    _
  // Predicated region
  $region18: #{lenet_forward.7} parent=0 // pred_check
    _
  $region19: #{lenet_forward.7} parent=0 // pred_check_branch
    %320 = sbr.rel (0) target = $region21
  $region20: #{lenet_forward.7} parent=0 // pred_region
    _
  $region21: #{lenet_forward.7} parent=0 // pred_fallthru
    _

</llo_original>
